<compile_context>
chip_gen: v5e
topology: v5e:2x2
jax: 0.10.0
libtpu: 0.0.40
codegen_flags: <defaults>
</compile_context>

<pallas_src>
import numpy as np
import jax
import jax.numpy as jnp
from jax import lax
from jax.experimental import pallas as pl
from jax.experimental.pallas import tpu as pltpu


def _pick_channel_block(cimg, d, hw, dtype_bytes=4, bytes_cap=2 << 20):
    """Largest divisor of cimg whose (cb, D, HW) block fits the byte cap while
    keeping >= 2 grid steps along the channel axis for software pipelining."""
    best = 1
    for cb in range(1, cimg + 1):
        if cimg % cb:
            continue
        if cb * d * hw * dtype_bytes > bytes_cap:
            continue
        if cimg // cb < 2 and cb != 1:
            continue
        best = cb
    return best


def radar_occupancy_forward(image_voxel_features, radar_features, params, eps=1e-5):
    """image_voxel_features: (B, Cimg, D, H, W);  radar_features: (B, Cin, H, W)."""
    B, Cimg, D, H, W = image_voxel_features.shape
    _, Cin, Hr, Wr = radar_features.shape
    assert (H, W) == (Hr, Wr), "interpolate branch not implemented"
    Cmid = params['w1'].shape[0]
    HW = H * W
    HWe = HW + 2 * (W + 1)          # flat grid zero-extended by W+1 on each side
    f32 = jnp.float32

    # ---- parameter folding (BN eval-mode folded into conv1 weights/bias) ----
    scale = params['gamma'] / jnp.sqrt(params['running_var'] + eps)
    w1f = jnp.transpose(params['w1'] * scale[:, None, None, None],
                        (2, 3, 0, 1)).reshape(9, Cmid, Cin).astype(f32)
    b1f = ((params['b1'] - params['running_mean']) * scale
           + params['beta']).reshape(Cmid, 1).astype(f32)
    w2f = jnp.transpose(params['w2'], (2, 3, 0, 1)).reshape(9, D, Cmid).astype(f32)
    b2f = params['b2'].reshape(D, 1).astype(f32)

    # ---- layout prep: HW on lanes, no transposes / pads of the big tensor ----
    x_ext = jnp.pad(radar_features.reshape(B, Cin, HW).astype(f32),
                    ((0, 0), (0, 0), (W + 1, W + 1)))                  # (B,Cin,HWe)
    col = jnp.arange(HW, dtype=jnp.int32) % W
    col_mask = jnp.stack([(col != 0), (col != W - 1)]).astype(f32)     # (2, HW)
    img = image_voxel_features.reshape(B, Cimg, D, HW)                 # free reshape

    c_blk = _pick_channel_block(Cimg, D, HW,
                                dtype_bytes=image_voxel_features.dtype.itemsize)
    nc = Cimg // c_blk

    def kernel(x_ref, mask_ref, w1_ref, b1_ref, w2_ref, b2_ref, img_ref,
               occ_ref, out_ref, h_ext, occ_sc):
        c = pl.program_id(1)

        @pl.when(c == 0)
        def _():
            # ---- conv1 (3x3, zero pad) + folded BN + ReLU ----
            acc1 = jnp.zeros((Cmid, HW), f32)
            for kx in range(3):
                part = jnp.zeros((Cmid, HW), f32)
                for ky in range(3):
                    s = ky * W + kx
                    part = part + jnp.dot(w1_ref[3 * ky + kx],
                                          x_ref[0, :, s:s + HW],
                                          preferred_element_type=f32)
                if kx == 0:
                    part = part * mask_ref[0:1, :]
                elif kx == 2:
                    part = part * mask_ref[1:2, :]
                acc1 = acc1 + part
            h = jnp.maximum(acc1 + b1_ref[...], 0.0)                   # (Cmid, HW)

            # zero-extended hidden features kept in VMEM (never hits HBM)
            h_ext[...] = jnp.zeros_like(h_ext)
            h_ext[:, W + 1:W + 1 + HW] = h

            # ---- conv2 (3x3, zero pad) + bias + sigmoid ----
            acc2 = jnp.zeros((D, HW), f32)
            for kx in range(3):
                part = jnp.zeros((D, HW), f32)
                for ky in range(3):
                    s = ky * W + kx
                    part = part + jnp.dot(w2_ref[3 * ky + kx],
                                          h_ext[:, s:s + HW],
                                          preferred_element_type=f32)
                if kx == 0:
                    part = part * mask_ref[0:1, :]
                elif kx == 2:
                    part = part * mask_ref[1:2, :]
                acc2 = acc2 + part
            occ = jax.nn.sigmoid(acc2 + b2_ref[...])                   # (D, HW)
            occ_sc[...] = occ
            occ_ref[0] = occ

        # occupancy-weighted image voxel features (lane-dense, every step)
        out_ref[0] = (img_ref[0] * occ_sc[...]).astype(out_ref.dtype)

    occ_flat, spat_flat = pl.pallas_call(
        kernel,
        out_shape=(jax.ShapeDtypeStruct((B, D, HW), f32),
                   jax.ShapeDtypeStruct((B, Cimg, D, HW),
                                        image_voxel_features.dtype)),
        grid_spec=pltpu.PrefetchScalarGridSpec(
            num_scalar_prefetch=0, grid=(B, nc),
            in_specs=[
                pl.BlockSpec((1, Cin, HWe), lambda b, c: (b, 0, 0)),
                pl.BlockSpec((2, HW), lambda b, c: (0, 0)),
                pl.BlockSpec((9, Cmid, Cin), lambda b, c: (0, 0, 0)),
                pl.BlockSpec((Cmid, 1), lambda b, c: (0, 0)),
                pl.BlockSpec((9, D, Cmid), lambda b, c: (0, 0, 0)),
                pl.BlockSpec((D, 1), lambda b, c: (0, 0)),
                pl.BlockSpec((1, c_blk, D, HW), lambda b, c: (b, c, 0, 0)),
            ],
            out_specs=[
                pl.BlockSpec((1, D, HW), lambda b, c: (b, 0, 0)),
                pl.BlockSpec((1, c_blk, D, HW), lambda b, c: (b, c, 0, 0)),
            ],
            scratch_shapes=[pltpu.VMEM((Cmid, HWe), f32),
                            pltpu.VMEM((D, HW), f32)],
        ),
        compiler_params=pltpu.CompilerParams(
            dimension_semantics=("parallel", "arbitrary")),
    )(x_ext, col_mask, w1f, b1f, w2f, b2f, img)

    # back to PyTorch layouts with free reshapes only
    radar_occupancy = occ_flat.reshape(B, D, H, W)[:, None]            # (B,1,D,H,W)
    spatial_features = spat_flat.reshape(B, Cimg, D, H, W)             # (B,C,D,H,W)
    return spatial_features, radar_occupancy


def reference_forward(image_voxel_features, radar_features, params, eps=1e-5):
    """Pure-JAX reference (matches the PyTorch forward in eval mode)."""
    dn = ('NCHW', 'OIHW', 'NCHW')
    y = lax.conv_general_dilated(radar_features, params['w1'], (1, 1), 'SAME',
                                 dimension_numbers=dn)
    y = y + params['b1'][None, :, None, None]
    y = (y - params['running_mean'][None, :, None, None]) \
        / jnp.sqrt(params['running_var'] + eps)[None, :, None, None]
    y = y * params['gamma'][None, :, None, None] + params['beta'][None, :, None, None]
    y = jnp.maximum(y, 0.0)
    y = lax.conv_general_dilated(y, params['w2'], (1, 1), 'SAME',
                                 dimension_numbers=dn)
    y = y + params['b2'][None, :, None, None]
    occ = jax.nn.sigmoid(y)[:, None]
    return image_voxel_features * occ, occ


if __name__ == "__main__":
    # grid config: pcr/voxel_size -> grid_size = [16, 16, 8]  =>  D = 8
    pcr = np.array([0.0, -8.0, -2.0, 16.0, 8.0, 2.0], dtype=np.float32)
    voxel_size = np.array([1.0, 1.0, 0.5], dtype=np.float32)
    grid_size = np.round((pcr[3:] - pcr[:3]) / voxel_size).astype(np.int32)
    X, Y, D = int(grid_size[0]), int(grid_size[1]), int(grid_size[2])
    H, W = Y, X

    B, Cimg, Cin = 2, 4, 16        # RADAR_INPUT_CHANNELS = 16
    Cmid = Cin // 2

    key = jax.random.PRNGKey(0)
    ks = jax.random.split(key, 9)
    params = dict(
        w1=0.1 * jax.random.normal(ks[0], (Cmid, Cin, 3, 3), jnp.float32),
        b1=0.1 * jax.random.normal(ks[1], (Cmid,), jnp.float32),
        gamma=1.0 + 0.1 * jax.random.normal(ks[2], (Cmid,), jnp.float32),
        beta=0.1 * jax.random.normal(ks[3], (Cmid,), jnp.float32),
        running_mean=0.1 * jax.random.normal(ks[4], (Cmid,), jnp.float32),
        running_var=0.5 + 0.5 * jax.nn.sigmoid(
            jax.random.normal(ks[5], (Cmid,), jnp.float32)),
        w2=0.1 * jax.random.normal(ks[6], (D, Cmid, 3, 3), jnp.float32),
        # last conv bias filled with bias_init_with_prob(0.01) = -log(0.99/0.01)
        b2=jnp.full((D,), float(-np.log((1 - 0.01) / 0.01)), jnp.float32),
    )

    image_voxel_features = jax.random.normal(ks[7], (B, Cimg, D, H, W), jnp.float32)
    radar_features = jax.random.normal(ks[8], (B, Cin, H, W), jnp.float32)

    spat, occ = jax.jit(radar_occupancy_forward)(
        image_voxel_features, radar_features, params)
    spat = jax.block_until_ready(spat)
    occ = jax.block_until_ready(occ)

    spat_ref, occ_ref = reference_forward(image_voxel_features, radar_features, params)
    assert spat.shape == (B, Cimg, D, H, W) and occ.shape == (B, 1, D, H, W)
    np.testing.assert_allclose(np.asarray(occ), np.asarray(occ_ref),
                               atol=2e-3, rtol=2e-3)
    np.testing.assert_allclose(np.asarray(spat), np.asarray(spat_ref),
                               atol=2e-3, rtol=2e-3)
    print("KERNEL_OK")
</pallas_src>

<mosaic_0001>
module attributes {stable_mosaic.version = 11 : i64} {
  func.func @kernel(%arg0: i32, %arg1: i32, %arg2: memref<1x16x290xf32, #tpu.memory_space<vmem>>, %arg3: memref<2x256xf32, #tpu.memory_space<vmem>>, %arg4: memref<9x8x16xf32, #tpu.memory_space<vmem>>, %arg5: memref<8x1xf32, #tpu.memory_space<vmem>>, %arg6: memref<9x8x8xf32, #tpu.memory_space<vmem>>, %arg7: memref<8x1xf32, #tpu.memory_space<vmem>>, %arg8: memref<1x2x8x256xf32, #tpu.memory_space<vmem>>, %arg9: memref<1x8x256xf32, #tpu.memory_space<vmem>>, %arg10: memref<1x2x8x256xf32, #tpu.memory_space<vmem>>, %arg11: memref<8x290xf32, #tpu.memory_space<vmem>>, %arg12: memref<8x256xf32, #tpu.memory_space<vmem>>) attributes {dimension_semantics = [#tpu.dimension_semantics<parallel>, #tpu.dimension_semantics<arbitrary>], iteration_bounds = array<i64: 2, 2>, scalar_prefetch = 0 : i64, scratch_operands = 2 : i64, tpu.core_type = #tpu.core_type<tc>, window_params = [{transform_indices = @transform_0, window_bounds = array<i64: 1, 16, 290>}, {pipeline_mode = #tpu.pipeline_mode<synchronous>, transform_indices = @transform_1, window_bounds = array<i64: 2, 256>}, {pipeline_mode = #tpu.pipeline_mode<synchronous>, transform_indices = @transform_2, window_bounds = array<i64: 9, 8, 16>}, {pipeline_mode = #tpu.pipeline_mode<synchronous>, transform_indices = @transform_3, window_bounds = array<i64: 8, 1>}, {pipeline_mode = #tpu.pipeline_mode<synchronous>, transform_indices = @transform_4, window_bounds = array<i64: 9, 8, 8>}, {pipeline_mode = #tpu.pipeline_mode<synchronous>, transform_indices = @transform_5, window_bounds = array<i64: 8, 1>}, {transform_indices = @transform_6, window_bounds = array<i64: 1, 2, 8, 256>}, {transform_indices = @transform_7, window_bounds = array<i64: 1, 8, 256>}, {transform_indices = @transform_8, window_bounds = array<i64: 1, 2, 8, 256>}]} {
    %c0_i32 = arith.constant 0 : i32
    %0 = arith.cmpi eq, %arg1, %c0_i32 : i32
    %1 = arith.extui %0 : i1 to i32
    %c0_i32_0 = arith.constant 0 : i32
    %2 = arith.cmpi ne, %1, %c0_i32_0 : i32
    scf.if %2 {
      %cst = arith.constant 0.000000e+00 : f32
      %12 = vector.broadcast %cst : f32 to vector<8x256xf32>
      %cst_10 = arith.constant 0.000000e+00 : f32
      %13 = vector.broadcast %cst_10 : f32 to vector<8x256xf32>
      %c0_11 = arith.constant 0 : index
      %c0_12 = arith.constant 0 : index
      %c0_13 = arith.constant 0 : index
      %14 = vector.load %arg4[%c0_11, %c0_12, %c0_13] : memref<9x8x16xf32, #tpu.memory_space<vmem>>, vector<1x8x16xf32>
      %15 = vector.shape_cast %14 : vector<1x8x16xf32> to vector<8x16xf32>
      %c0_14 = arith.constant 0 : index
      %c0_15 = arith.constant 0 : index
      %c0_16 = arith.constant 0 : index
      %16 = vector.load %arg2[%c0_14, %c0_15, %c0_16] : memref<1x16x290xf32, #tpu.memory_space<vmem>>, vector<1x16x256xf32>
      %17 = vector.shape_cast %16 : vector<1x16x256xf32> to vector<16x256xf32>
      %cst_17 = arith.constant dense<0.000000e+00> : vector<8x256xf32>
      %18 = tpu.matmul %15, %17, %cst_17 {dimension_numbers = #tpu.dot_dimension_numbers<[1], [0], [0], [1], [0, 0, 1, 1], [], []>} : vector<8x16xf32>, vector<16x256xf32>, vector<8x256xf32> -> vector<8x256xf32>
      %19 = arith.addf %13, %18 : vector<8x256xf32>
      %c3 = arith.constant 3 : index
      %c0_18 = arith.constant 0 : index
      %c0_19 = arith.constant 0 : index
      %20 = vector.load %arg4[%c3, %c0_18, %c0_19] : memref<9x8x16xf32, #tpu.memory_space<vmem>>, vector<1x8x16xf32>
      %21 = vector.shape_cast %20 : vector<1x8x16xf32> to vector<8x16xf32>
      %c0_20 = arith.constant 0 : index
      %c0_21 = arith.constant 0 : index
      %c16 = arith.constant 16 : index
      %22 = vector.load %arg2[%c0_20, %c0_21, %c16] : memref<1x16x290xf32, #tpu.memory_space<vmem>>, vector<1x16x256xf32>
      %23 = vector.shape_cast %22 : vector<1x16x256xf32> to vector<16x256xf32>
      %cst_22 = arith.constant dense<0.000000e+00> : vector<8x256xf32>
      %24 = tpu.matmul %21, %23, %cst_22 {dimension_numbers = #tpu.dot_dimension_numbers<[1], [0], [0], [1], [0, 0, 1, 1], [], []>} : vector<8x16xf32>, vector<16x256xf32>, vector<8x256xf32> -> vector<8x256xf32>
      %25 = arith.addf %19, %24 : vector<8x256xf32>
      %c6 = arith.constant 6 : index
      %c0_23 = arith.constant 0 : index
      %c0_24 = arith.constant 0 : index
      %26 = vector.load %arg4[%c6, %c0_23, %c0_24] : memref<9x8x16xf32, #tpu.memory_space<vmem>>, vector<1x8x16xf32>
      %27 = vector.shape_cast %26 : vector<1x8x16xf32> to vector<8x16xf32>
      %c0_25 = arith.constant 0 : index
      %c0_26 = arith.constant 0 : index
      %c32 = arith.constant 32 : index
      %28 = vector.load %arg2[%c0_25, %c0_26, %c32] : memref<1x16x290xf32, #tpu.memory_space<vmem>>, vector<1x16x256xf32>
      %29 = vector.shape_cast %28 : vector<1x16x256xf32> to vector<16x256xf32>
      %cst_27 = arith.constant dense<0.000000e+00> : vector<8x256xf32>
      %30 = tpu.matmul %27, %29, %cst_27 {dimension_numbers = #tpu.dot_dimension_numbers<[1], [0], [0], [1], [0, 0, 1, 1], [], []>} : vector<8x16xf32>, vector<16x256xf32>, vector<8x256xf32> -> vector<8x256xf32>
      %31 = arith.addf %25, %30 : vector<8x256xf32>
      %c0_28 = arith.constant 0 : index
      %c0_29 = arith.constant 0 : index
      %32 = vector.load %arg3[%c0_28, %c0_29] : memref<2x256xf32, #tpu.memory_space<vmem>>, vector<1x256xf32>
      %33 = vector.broadcast %32 : vector<1x256xf32> to vector<8x256xf32>
      %34 = arith.mulf %31, %33 : vector<8x256xf32>
      %35 = arith.addf %12, %34 : vector<8x256xf32>
      %cst_30 = arith.constant 0.000000e+00 : f32
      %36 = vector.broadcast %cst_30 : f32 to vector<8x256xf32>
      %c1 = arith.constant 1 : index
      %c0_31 = arith.constant 0 : index
      %c0_32 = arith.constant 0 : index
      %37 = vector.load %arg4[%c1, %c0_31, %c0_32] : memref<9x8x16xf32, #tpu.memory_space<vmem>>, vector<1x8x16xf32>
      %38 = vector.shape_cast %37 : vector<1x8x16xf32> to vector<8x16xf32>
      %c0_33 = arith.constant 0 : index
      %c0_34 = arith.constant 0 : index
      %c1_35 = arith.constant 1 : index
      %39 = vector.load %arg2[%c0_33, %c0_34, %c1_35] : memref<1x16x290xf32, #tpu.memory_space<vmem>>, vector<1x16x256xf32>
      %40 = vector.shape_cast %39 : vector<1x16x256xf32> to vector<16x256xf32>
      %cst_36 = arith.constant dense<0.000000e+00> : vector<8x256xf32>
      %41 = tpu.matmul %38, %40, %cst_36 {dimension_numbers = #tpu.dot_dimension_numbers<[1], [0], [0], [1], [0, 0, 1, 1], [], []>} : vector<8x16xf32>, vector<16x256xf32>, vector<8x256xf32> -> vector<8x256xf32>
      %42 = arith.addf %36, %41 : vector<8x256xf32>
      %c4 = arith.constant 4 : index
      %c0_37 = arith.constant 0 : index
      %c0_38 = arith.constant 0 : index
      %43 = vector.load %arg4[%c4, %c0_37, %c0_38] : memref<9x8x16xf32, #tpu.memory_space<vmem>>, vector<1x8x16xf32>
      %44 = vector.shape_cast %43 : vector<1x8x16xf32> to vector<8x16xf32>
      %c0_39 = arith.constant 0 : index
      %c0_40 = arith.constant 0 : index
      %c17 = arith.constant 17 : index
      %45 = vector.load %arg2[%c0_39, %c0_40, %c17] : memref<1x16x290xf32, #tpu.memory_space<vmem>>, vector<1x16x256xf32>
      %46 = vector.shape_cast %45 : vector<1x16x256xf32> to vector<16x256xf32>
      %cst_41 = arith.constant dense<0.000000e+00> : vector<8x256xf32>
      %47 = tpu.matmul %44, %46, %cst_41 {dimension_numbers = #tpu.dot_dimension_numbers<[1], [0], [0], [1], [0, 0, 1, 1], [], []>} : vector<8x16xf32>, vector<16x256xf32>, vector<8x256xf32> -> vector<8x256xf32>
      %48 = arith.addf %42, %47 : vector<8x256xf32>
      %c7 = arith.constant 7 : index
      %c0_42 = arith.constant 0 : index
      %c0_43 = arith.constant 0 : index
      %49 = vector.load %arg4[%c7, %c0_42, %c0_43] : memref<9x8x16xf32, #tpu.memory_space<vmem>>, vector<1x8x16xf32>
      %50 = vector.shape_cast %49 : vector<1x8x16xf32> to vector<8x16xf32>
      %c0_44 = arith.constant 0 : index
      %c0_45 = arith.constant 0 : index
      %c33 = arith.constant 33 : index
      %51 = vector.load %arg2[%c0_44, %c0_45, %c33] : memref<1x16x290xf32, #tpu.memory_space<vmem>>, vector<1x16x256xf32>
      %52 = vector.shape_cast %51 : vector<1x16x256xf32> to vector<16x256xf32>
      %cst_46 = arith.constant dense<0.000000e+00> : vector<8x256xf32>
      %53 = tpu.matmul %50, %52, %cst_46 {dimension_numbers = #tpu.dot_dimension_numbers<[1], [0], [0], [1], [0, 0, 1, 1], [], []>} : vector<8x16xf32>, vector<16x256xf32>, vector<8x256xf32> -> vector<8x256xf32>
      %54 = arith.addf %48, %53 : vector<8x256xf32>
      %55 = arith.addf %35, %54 : vector<8x256xf32>
      %cst_47 = arith.constant 0.000000e+00 : f32
      %56 = vector.broadcast %cst_47 : f32 to vector<8x256xf32>
      %c2 = arith.constant 2 : index
      %c0_48 = arith.constant 0 : index
      %c0_49 = arith.constant 0 : index
      %57 = vector.load %arg4[%c2, %c0_48, %c0_49] : memref<9x8x16xf32, #tpu.memory_space<vmem>>, vector<1x8x16xf32>
      %58 = vector.shape_cast %57 : vector<1x8x16xf32> to vector<8x16xf32>
      %c0_50 = arith.constant 0 : index
      %c0_51 = arith.constant 0 : index
      %c2_52 = arith.constant 2 : index
      %59 = vector.load %arg2[%c0_50, %c0_51, %c2_52] : memref<1x16x290xf32, #tpu.memory_space<vmem>>, vector<1x16x256xf32>
      %60 = vector.shape_cast %59 : vector<1x16x256xf32> to vector<16x256xf32>
      %cst_53 = arith.constant dense<0.000000e+00> : vector<8x256xf32>
      %61 = tpu.matmul %58, %60, %cst_53 {dimension_numbers = #tpu.dot_dimension_numbers<[1], [0], [0], [1], [0, 0, 1, 1], [], []>} : vector<8x16xf32>, vector<16x256xf32>, vector<8x256xf32> -> vector<8x256xf32>
      %62 = arith.addf %56, %61 : vector<8x256xf32>
      %c5 = arith.constant 5 : index
      %c0_54 = arith.constant 0 : index
      %c0_55 = arith.constant 0 : index
      %63 = vector.load %arg4[%c5, %c0_54, %c0_55] : memref<9x8x16xf32, #tpu.memory_space<vmem>>, vector<1x8x16xf32>
      %64 = vector.shape_cast %63 : vector<1x8x16xf32> to vector<8x16xf32>
      %c0_56 = arith.constant 0 : index
      %c0_57 = arith.constant 0 : index
      %c18 = arith.constant 18 : index
      %65 = vector.load %arg2[%c0_56, %c0_57, %c18] : memref<1x16x290xf32, #tpu.memory_space<vmem>>, vector<1x16x256xf32>
      %66 = vector.shape_cast %65 : vector<1x16x256xf32> to vector<16x256xf32>
      %cst_58 = arith.constant dense<0.000000e+00> : vector<8x256xf32>
      %67 = tpu.matmul %64, %66, %cst_58 {dimension_numbers = #tpu.dot_dimension_numbers<[1], [0], [0], [1], [0, 0, 1, 1], [], []>} : vector<8x16xf32>, vector<16x256xf32>, vector<8x256xf32> -> vector<8x256xf32>
      %68 = arith.addf %62, %67 : vector<8x256xf32>
      %c8 = arith.constant 8 : index
      %c0_59 = arith.constant 0 : index
      %c0_60 = arith.constant 0 : index
      %69 = vector.load %arg4[%c8, %c0_59, %c0_60] : memref<9x8x16xf32, #tpu.memory_space<vmem>>, vector<1x8x16xf32>
      %70 = vector.shape_cast %69 : vector<1x8x16xf32> to vector<8x16xf32>
      %c0_61 = arith.constant 0 : index
      %c0_62 = arith.constant 0 : index
      %c34 = arith.constant 34 : index
      %71 = vector.load %arg2[%c0_61, %c0_62, %c34] : memref<1x16x290xf32, #tpu.memory_space<vmem>>, vector<1x16x256xf32>
      %72 = vector.shape_cast %71 : vector<1x16x256xf32> to vector<16x256xf32>
      %cst_63 = arith.constant dense<0.000000e+00> : vector<8x256xf32>
      %73 = tpu.matmul %70, %72, %cst_63 {dimension_numbers = #tpu.dot_dimension_numbers<[1], [0], [0], [1], [0, 0, 1, 1], [], []>} : vector<8x16xf32>, vector<16x256xf32>, vector<8x256xf32> -> vector<8x256xf32>
      %74 = arith.addf %68, %73 : vector<8x256xf32>
      %c1_64 = arith.constant 1 : index
      %c0_65 = arith.constant 0 : index
      %75 = vector.load %arg3[%c1_64, %c0_65] : memref<2x256xf32, #tpu.memory_space<vmem>>, vector<1x256xf32>
      %76 = vector.broadcast %75 : vector<1x256xf32> to vector<8x256xf32>
      %77 = arith.mulf %74, %76 : vector<8x256xf32>
      %78 = arith.addf %55, %77 : vector<8x256xf32>
      %c0_66 = arith.constant 0 : index
      %c0_67 = arith.constant 0 : index
      %79 = vector.load %arg5[%c0_66, %c0_67] : memref<8x1xf32, #tpu.memory_space<vmem>>, vector<8x1xf32>
      %80 = vector.broadcast %79 : vector<8x1xf32> to vector<8x256xf32>
      %81 = arith.addf %78, %80 : vector<8x256xf32>
      %cst_68 = arith.constant 0.000000e+00 : f32
      %82 = vector.broadcast %cst_68 : f32 to vector<8x256xf32>
      %83 = arith.maximumf %81, %82 : vector<8x256xf32>
      %cst_69 = arith.constant 0.000000e+00 : f32
      %84 = vector.broadcast %cst_69 : f32 to vector<8x290xf32>
      %c0_70 = arith.constant 0 : index
      %c0_71 = arith.constant 0 : index
      %85 = vector.load %arg11[%c0_70, %c0_71] : memref<8x290xf32, #tpu.memory_space<vmem>>, vector<8x290xf32>
      tpu.vector_store %arg11[%c0_70, %c0_71], %84 {strides = array<i32>} : memref<8x290xf32, #tpu.memory_space<vmem>>, vector<8x290xf32>,
      %c0_72 = arith.constant 0 : index
      %c17_73 = arith.constant 17 : index
      %86 = vector.load %arg11[%c0_72, %c17_73] : memref<8x290xf32, #tpu.memory_space<vmem>>, vector<8x256xf32>
      tpu.vector_store %arg11[%c0_72, %c17_73], %83 {strides = array<i32>} : memref<8x290xf32, #tpu.memory_space<vmem>>, vector<8x256xf32>,
      %cst_74 = arith.constant 0.000000e+00 : f32
      %87 = vector.broadcast %cst_74 : f32 to vector<8x256xf32>
      %cst_75 = arith.constant 0.000000e+00 : f32
      %88 = vector.broadcast %cst_75 : f32 to vector<8x256xf32>
      %c0_76 = arith.constant 0 : index
      %c0_77 = arith.constant 0 : index
      %c0_78 = arith.constant 0 : index
      %89 = vector.load %arg6[%c0_76, %c0_77, %c0_78] : memref<9x8x8xf32, #tpu.memory_space<vmem>>, vector<1x8x8xf32>
      %90 = vector.shape_cast %89 : vector<1x8x8xf32> to vector<8x8xf32>
      %c0_79 = arith.constant 0 : index
      %c0_80 = arith.constant 0 : index
      %91 = vector.load %arg11[%c0_79, %c0_80] : memref<8x290xf32, #tpu.memory_space<vmem>>, vector<8x256xf32>
      %cst_81 = arith.constant dense<0.000000e+00> : vector<8x256xf32>
      %92 = tpu.matmul %90, %91, %cst_81 {dimension_numbers = #tpu.dot_dimension_numbers<[1], [0], [0], [1], [0, 0, 1, 1], [], []>} : vector<8x8xf32>, vector<8x256xf32>, vector<8x256xf32> -> vector<8x256xf32>
      %93 = arith.addf %88, %92 : vector<8x256xf32>
      %c3_82 = arith.constant 3 : index
      %c0_83 = arith.constant 0 : index
      %c0_84 = arith.constant 0 : index
      %94 = vector.load %arg6[%c3_82, %c0_83, %c0_84] : memref<9x8x8xf32, #tpu.memory_space<vmem>>, vector<1x8x8xf32>
      %95 = vector.shape_cast %94 : vector<1x8x8xf32> to vector<8x8xf32>
      %c0_85 = arith.constant 0 : index
      %c16_86 = arith.constant 16 : index
      %96 = vector.load %arg11[%c0_85, %c16_86] : memref<8x290xf32, #tpu.memory_space<vmem>>, vector<8x256xf32>
      %cst_87 = arith.constant dense<0.000000e+00> : vector<8x256xf32>
      %97 = tpu.matmul %95, %96, %cst_87 {dimension_numbers = #tpu.dot_dimension_numbers<[1], [0], [0], [1], [0, 0, 1, 1], [], []>} : vector<8x8xf32>, vector<8x256xf32>, vector<8x256xf32> -> vector<8x256xf32>
      %98 = arith.addf %93, %97 : vector<8x256xf32>
      %c6_88 = arith.constant 6 : index
      %c0_89 = arith.constant 0 : index
      %c0_90 = arith.constant 0 : index
      %99 = vector.load %arg6[%c6_88, %c0_89, %c0_90] : memref<9x8x8xf32, #tpu.memory_space<vmem>>, vector<1x8x8xf32>
      %100 = vector.shape_cast %99 : vector<1x8x8xf32> to vector<8x8xf32>
      %c0_91 = arith.constant 0 : index
      %c32_92 = arith.constant 32 : index
      %101 = vector.load %arg11[%c0_91, %c32_92] : memref<8x290xf32, #tpu.memory_space<vmem>>, vector<8x256xf32>
      %cst_93 = arith.constant dense<0.000000e+00> : vector<8x256xf32>
      %102 = tpu.matmul %100, %101, %cst_93 {dimension_numbers = #tpu.dot_dimension_numbers<[1], [0], [0], [1], [0, 0, 1, 1], [], []>} : vector<8x8xf32>, vector<8x256xf32>, vector<8x256xf32> -> vector<8x256xf32>
      %103 = arith.addf %98, %102 : vector<8x256xf32>
      %c0_94 = arith.constant 0 : index
      %c0_95 = arith.constant 0 : index
      %104 = vector.load %arg3[%c0_94, %c0_95] : memref<2x256xf32, #tpu.memory_space<vmem>>, vector<1x256xf32>
      %105 = vector.broadcast %104 : vector<1x256xf32> to vector<8x256xf32>
      %106 = arith.mulf %103, %105 : vector<8x256xf32>
      %107 = arith.addf %87, %106 : vector<8x256xf32>
      %cst_96 = arith.constant 0.000000e+00 : f32
      %108 = vector.broadcast %cst_96 : f32 to vector<8x256xf32>
      %c1_97 = arith.constant 1 : index
      %c0_98 = arith.constant 0 : index
      %c0_99 = arith.constant 0 : index
      %109 = vector.load %arg6[%c1_97, %c0_98, %c0_99] : memref<9x8x8xf32, #tpu.memory_space<vmem>>, vector<1x8x8xf32>
      %110 = vector.shape_cast %109 : vector<1x8x8xf32> to vector<8x8xf32>
      %c0_100 = arith.constant 0 : index
      %c1_101 = arith.constant 1 : index
      %111 = vector.load %arg11[%c0_100, %c1_101] : memref<8x290xf32, #tpu.memory_space<vmem>>, vector<8x256xf32>
      %cst_102 = arith.constant dense<0.000000e+00> : vector<8x256xf32>
      %112 = tpu.matmul %110, %111, %cst_102 {dimension_numbers = #tpu.dot_dimension_numbers<[1], [0], [0], [1], [0, 0, 1, 1], [], []>} : vector<8x8xf32>, vector<8x256xf32>, vector<8x256xf32> -> vector<8x256xf32>
      %113 = arith.addf %108, %112 : vector<8x256xf32>
      %c4_103 = arith.constant 4 : index
      %c0_104 = arith.constant 0 : index
      %c0_105 = arith.constant 0 : index
      %114 = vector.load %arg6[%c4_103, %c0_104, %c0_105] : memref<9x8x8xf32, #tpu.memory_space<vmem>>, vector<1x8x8xf32>
      %115 = vector.shape_cast %114 : vector<1x8x8xf32> to vector<8x8xf32>
      %c0_106 = arith.constant 0 : index
      %c17_107 = arith.constant 17 : index
      %116 = vector.load %arg11[%c0_106, %c17_107] : memref<8x290xf32, #tpu.memory_space<vmem>>, vector<8x256xf32>
      %cst_108 = arith.constant dense<0.000000e+00> : vector<8x256xf32>
      %117 = tpu.matmul %115, %116, %cst_108 {dimension_numbers = #tpu.dot_dimension_numbers<[1], [0], [0], [1], [0, 0, 1, 1], [], []>} : vector<8x8xf32>, vector<8x256xf32>, vector<8x256xf32> -> vector<8x256xf32>
      %118 = arith.addf %113, %117 : vector<8x256xf32>
      %c7_109 = arith.constant 7 : index
      %c0_110 = arith.constant 0 : index
      %c0_111 = arith.constant 0 : index
      %119 = vector.load %arg6[%c7_109, %c0_110, %c0_111] : memref<9x8x8xf32, #tpu.memory_space<vmem>>, vector<1x8x8xf32>
      %120 = vector.shape_cast %119 : vector<1x8x8xf32> to vector<8x8xf32>
      %c0_112 = arith.constant 0 : index
      %c33_113 = arith.constant 33 : index
      %121 = vector.load %arg11[%c0_112, %c33_113] : memref<8x290xf32, #tpu.memory_space<vmem>>, vector<8x256xf32>
      %cst_114 = arith.constant dense<0.000000e+00> : vector<8x256xf32>
      %122 = tpu.matmul %120, %121, %cst_114 {dimension_numbers = #tpu.dot_dimension_numbers<[1], [0], [0], [1], [0, 0, 1, 1], [], []>} : vector<8x8xf32>, vector<8x256xf32>, vector<8x256xf32> -> vector<8x256xf32>
      %123 = arith.addf %118, %122 : vector<8x256xf32>
      %124 = arith.addf %107, %123 : vector<8x256xf32>
      %cst_115 = arith.constant 0.000000e+00 : f32
      %125 = vector.broadcast %cst_115 : f32 to vector<8x256xf32>
      %c2_116 = arith.constant 2 : index
      %c0_117 = arith.constant 0 : index
      %c0_118 = arith.constant 0 : index
      %126 = vector.load %arg6[%c2_116, %c0_117, %c0_118] : memref<9x8x8xf32, #tpu.memory_space<vmem>>, vector<1x8x8xf32>
      %127 = vector.shape_cast %126 : vector<1x8x8xf32> to vector<8x8xf32>
      %c0_119 = arith.constant 0 : index
      %c2_120 = arith.constant 2 : index
      %128 = vector.load %arg11[%c0_119, %c2_120] : memref<8x290xf32, #tpu.memory_space<vmem>>, vector<8x256xf32>
      %cst_121 = arith.constant dense<0.000000e+00> : vector<8x256xf32>
      %129 = tpu.matmul %127, %128, %cst_121 {dimension_numbers = #tpu.dot_dimension_numbers<[1], [0], [0], [1], [0, 0, 1, 1], [], []>} : vector<8x8xf32>, vector<8x256xf32>, vector<8x256xf32> -> vector<8x256xf32>
      %130 = arith.addf %125, %129 : vector<8x256xf32>
      %c5_122 = arith.constant 5 : index
      %c0_123 = arith.constant 0 : index
      %c0_124 = arith.constant 0 : index
      %131 = vector.load %arg6[%c5_122, %c0_123, %c0_124] : memref<9x8x8xf32, #tpu.memory_space<vmem>>, vector<1x8x8xf32>
      %132 = vector.shape_cast %131 : vector<1x8x8xf32> to vector<8x8xf32>
      %c0_125 = arith.constant 0 : index
      %c18_126 = arith.constant 18 : index
      %133 = vector.load %arg11[%c0_125, %c18_126] : memref<8x290xf32, #tpu.memory_space<vmem>>, vector<8x256xf32>
      %cst_127 = arith.constant dense<0.000000e+00> : vector<8x256xf32>
      %134 = tpu.matmul %132, %133, %cst_127 {dimension_numbers = #tpu.dot_dimension_numbers<[1], [0], [0], [1], [0, 0, 1, 1], [], []>} : vector<8x8xf32>, vector<8x256xf32>, vector<8x256xf32> -> vector<8x256xf32>
      %135 = arith.addf %130, %134 : vector<8x256xf32>
      %c8_128 = arith.constant 8 : index
      %c0_129 = arith.constant 0 : index
      %c0_130 = arith.constant 0 : index
      %136 = vector.load %arg6[%c8_128, %c0_129, %c0_130] : memref<9x8x8xf32, #tpu.memory_space<vmem>>, vector<1x8x8xf32>
      %137 = vector.shape_cast %136 : vector<1x8x8xf32> to vector<8x8xf32>
      %c0_131 = arith.constant 0 : index
      %c34_132 = arith.constant 34 : index
      %138 = vector.load %arg11[%c0_131, %c34_132] : memref<8x290xf32, #tpu.memory_space<vmem>>, vector<8x256xf32>
      %cst_133 = arith.constant dense<0.000000e+00> : vector<8x256xf32>
      %139 = tpu.matmul %137, %138, %cst_133 {dimension_numbers = #tpu.dot_dimension_numbers<[1], [0], [0], [1], [0, 0, 1, 1], [], []>} : vector<8x8xf32>, vector<8x256xf32>, vector<8x256xf32> -> vector<8x256xf32>
      %140 = arith.addf %135, %139 : vector<8x256xf32>
      %c1_134 = arith.constant 1 : index
      %c0_135 = arith.constant 0 : index
      %141 = vector.load %arg3[%c1_134, %c0_135] : memref<2x256xf32, #tpu.memory_space<vmem>>, vector<1x256xf32>
      %142 = vector.broadcast %141 : vector<1x256xf32> to vector<8x256xf32>
      %143 = arith.mulf %140, %142 : vector<8x256xf32>
      %144 = arith.addf %124, %143 : vector<8x256xf32>
      %c0_136 = arith.constant 0 : index
      %c0_137 = arith.constant 0 : index
      %145 = vector.load %arg7[%c0_136, %c0_137] : memref<8x1xf32, #tpu.memory_space<vmem>>, vector<8x1xf32>
      %146 = vector.broadcast %145 : vector<8x1xf32> to vector<8x256xf32>
      %147 = arith.addf %144, %146 : vector<8x256xf32>
      %148 = arith.negf %147 : vector<8x256xf32>
      %149 = math.exp %148 : vector<8x256xf32>
      %cst_138 = arith.constant 1.000000e+00 : f32
      %150 = vector.broadcast %cst_138 : f32 to vector<8x256xf32>
      %151 = arith.addf %150, %149 : vector<8x256xf32>
      %152 = arith.divf %150, %151 : vector<8x256xf32>
      %c0_139 = arith.constant 0 : index
      %c0_140 = arith.constant 0 : index
      %153 = vector.load %arg12[%c0_139, %c0_140] : memref<8x256xf32, #tpu.memory_space<vmem>>, vector<8x256xf32>
      tpu.vector_store %arg12[%c0_139, %c0_140], %152 {strides = array<i32>} : memref<8x256xf32, #tpu.memory_space<vmem>>, vector<8x256xf32>,
      %c0_141 = arith.constant 0 : index
      %c0_142 = arith.constant 0 : index
      %c0_143 = arith.constant 0 : index
      %154 = vector.load %arg9[%c0_141, %c0_142, %c0_143] : memref<1x8x256xf32, #tpu.memory_space<vmem>>, vector<1x8x256xf32>
      %155 = vector.shape_cast %154 : vector<1x8x256xf32> to vector<8x256xf32>
      %156 = vector.shape_cast %152 : vector<8x256xf32> to vector<1x8x256xf32>
      tpu.vector_store %arg9[%c0_141, %c0_142, %c0_143], %156 {strides = array<i32>} : memref<1x8x256xf32, #tpu.memory_space<vmem>>, vector<1x8x256xf32>,
    } else {
    }
    %c0 = arith.constant 0 : index
    %c0_1 = arith.constant 0 : index
    %c0_2 = arith.constant 0 : index
    %c0_3 = arith.constant 0 : index
    %3 = vector.load %arg8[%c0, %c0_1, %c0_2, %c0_3] : memref<1x2x8x256xf32, #tpu.memory_space<vmem>>, vector<1x2x8x256xf32>
    %4 = vector.shape_cast %3 : vector<1x2x8x256xf32> to vector<2x8x256xf32>
    %c0_4 = arith.constant 0 : index
    %c0_5 = arith.constant 0 : index
    %5 = vector.load %arg12[%c0_4, %c0_5] : memref<8x256xf32, #tpu.memory_space<vmem>>, vector<8x256xf32>
    %6 = vector.shape_cast %5 : vector<8x256xf32> to vector<1x8x256xf32>
    %7 = vector.broadcast %6 : vector<1x8x256xf32> to vector<2x8x256xf32>
    %8 = arith.mulf %4, %7 : vector<2x8x256xf32>
    %c0_6 = arith.constant 0 : index
    %c0_7 = arith.constant 0 : index
    %c0_8 = arith.constant 0 : index
    %c0_9 = arith.constant 0 : index
    %9 = vector.load %arg10[%c0_6, %c0_7, %c0_8, %c0_9] : memref<1x2x8x256xf32, #tpu.memory_space<vmem>>, vector<1x2x8x256xf32>
    %10 = vector.shape_cast %9 : vector<1x2x8x256xf32> to vector<2x8x256xf32>
    %11 = vector.shape_cast %8 : vector<2x8x256xf32> to vector<1x2x8x256xf32>
    tpu.vector_store %arg10[%c0_6, %c0_7, %c0_8, %c0_9], %11 {strides = array<i32>} : memref<1x2x8x256xf32, #tpu.memory_space<vmem>>, vector<1x2x8x256xf32>,
    return
  }
  func.func @transform_0(%arg0: i32, %arg1: i32) -> (i32, i32, i32) {
    %c0_i32 = arith.constant 0 : i32
    %c0_i32_0 = arith.constant 0 : i32
    %c0_i32_1 = arith.constant 0 : i32
    return %arg0, %c0_i32, %c0_i32_0 : i32, i32, i32
  }
  func.func @transform_1(%arg0: i32, %arg1: i32) -> (i32, i32) {
    %c0_i32 = arith.constant 0 : i32
    %c0_i32_0 = arith.constant 0 : i32
    %c0_i32_1 = arith.constant 0 : i32
    return %c0_i32, %c0_i32_0 : i32, i32
  }
  func.func @transform_2(%arg0: i32, %arg1: i32) -> (i32, i32, i32) {
    %c0_i32 = arith.constant 0 : i32
    %c0_i32_0 = arith.constant 0 : i32
    %c0_i32_1 = arith.constant 0 : i32
    %c0_i32_2 = arith.constant 0 : i32
    return %c0_i32, %c0_i32_0, %c0_i32_1 : i32, i32, i32
  }
  func.func @transform_3(%arg0: i32, %arg1: i32) -> (i32, i32) {
    %c0_i32 = arith.constant 0 : i32
    %c0_i32_0 = arith.constant 0 : i32
    %c0_i32_1 = arith.constant 0 : i32
    return %c0_i32, %c0_i32_0 : i32, i32
  }
  func.func @transform_4(%arg0: i32, %arg1: i32) -> (i32, i32, i32) {
    %c0_i32 = arith.constant 0 : i32
    %c0_i32_0 = arith.constant 0 : i32
    %c0_i32_1 = arith.constant 0 : i32
    %c0_i32_2 = arith.constant 0 : i32
    return %c0_i32, %c0_i32_0, %c0_i32_1 : i32, i32, i32
  }
  func.func @transform_5(%arg0: i32, %arg1: i32) -> (i32, i32) {
    %c0_i32 = arith.constant 0 : i32
    %c0_i32_0 = arith.constant 0 : i32
    %c0_i32_1 = arith.constant 0 : i32
    return %c0_i32, %c0_i32_0 : i32, i32
  }
  func.func @transform_6(%arg0: i32, %arg1: i32) -> (i32, i32, i32, i32) {
    %c0_i32 = arith.constant 0 : i32
    %c0_i32_0 = arith.constant 0 : i32
    %c0_i32_1 = arith.constant 0 : i32
    return %arg0, %arg1, %c0_i32, %c0_i32_0 : i32, i32, i32, i32
  }
  func.func @transform_7(%arg0: i32, %arg1: i32) -> (i32, i32, i32) {
    %c0_i32 = arith.constant 0 : i32
    %c0_i32_0 = arith.constant 0 : i32
    %c0_i32_1 = arith.constant 0 : i32
    return %arg0, %c0_i32, %c0_i32_0 : i32, i32, i32
  }
  func.func @transform_8(%arg0: i32, %arg1: i32) -> (i32, i32, i32, i32) {
    %c0_i32 = arith.constant 0 : i32
    %c0_i32_0 = arith.constant 0 : i32
    %c0_i32_1 = arith.constant 0 : i32
    return %arg0, %arg1, %c0_i32, %c0_i32_0 : i32, i32, i32, i32
  }
}

</mosaic_0001>

<llo_original>
// kernel: radar_occupancy_forward.1
$region0: #{radar_occupancy_forward.1}
  #allocation0 [shape = 'u32[]', space=smem, size = 0x4, offset = 0x4, fixed_abs, tag = 'smem constant byte address 0x4 - core index']
  #allocation1 [shape = 'u32[72,128]{1,0:T(1,128)}', space=vmem, size = 0x9000, scoped, tag = 'internal scratch']
  #allocation2 [shape = 'f32[8,290]{1,0:T(8,128)}', space=vmem, size = 0x3000, scoped, tag = 'scratch operand']
  #allocation3 [shape = 'f32[8,256]{1,0:T(8,128)}', space=vmem, size = 0x2000, scoped, tag = 'scratch operand']
  %s0 = inlined_call_operand.vmem [shape: f32[2,16,290], index: 0, kind: input, shape index: {}]
  %s1 = inlined_call_operand.vmem [shape: f32[2,256], index: 1, kind: input, shape index: {}]
  %s2 = inlined_call_operand.vmem [shape: f32[9,8,16], index: 2, kind: input, shape index: {}]
  %s3 = inlined_call_operand.vmem [shape: f32[8,1], index: 3, kind: input, shape index: {}]
  %s4 = inlined_call_operand.vmem [shape: f32[9,8,8], index: 4, kind: input, shape index: {}]
  %s5 = inlined_call_operand.vmem [shape: f32[8,1], index: 5, kind: input, shape index: {}]
  %s6 = inlined_call_operand.vmem [shape: f32[2,4,8,256], index: 6, kind: input, shape index: {}]
  %s7 = inlined_call_operand.vmem [shape: f32[2,8,256], index: 7, kind: output, shape index: {0}]
  %s8 = inlined_call_operand.vmem [shape: f32[2,4,8,256], index: 8, kind: output, shape index: {1}]
  %9 = xla_tuple %s7, %s8
  %s10 = sld [smem:[#allocation0]]
  $region73: #{radar_occupancy_forward.1} parent=0
    _
  %s12 = ssub.s32 1, %s10
  %s13 = scalar_select 0, %s12, %s10
  loop: start=0, step=1, limit=6
  $region2: #{radar_occupancy_forward.1} parent=0 // loop_pre_header
    _
  $region3: #{radar_occupancy_forward.1} parent=0 // loop_header
    %s15 = sphi 0, %s19
    %p16 = scmp.ge.s32.totalorder %s15, 6
    %s22 = sphi 0, %s34
    %s23 = sphi 0, %s30
    %s24 = sphi 0, %s22
    %s25 = sphi 0, %s23
    %s26 = sphi 0, %s24
    %s27 = sphi 0, %s25
    %s37 = sphi 0, %s39
    %s40 = sphi 0, %s37
    %s41 = sphi 0, %s40
    %s57 = sphi 0, %s41
    %s61 = sphi 0, %s61
    %s63 = sphi 0, %s61
    %s64 = sphi 0, %s63
    %s78 = sphi 0, %s64
    %s82 = sphi 0, %s82
    %s84 = sphi 0, %s82
    %s85 = sphi 0, %s84
    %s99 = sphi 0, %s85
    %s103 = sphi 0, %s103
    %s105 = sphi 0, %s103
    %s106 = sphi 0, %s105
    %s120 = sphi 0, %s106
    %s124 = sphi 0, %s124
    %s126 = sphi 0, %s124
    %s127 = sphi 0, %s126
    %s141 = sphi 0, %s127
    %s145 = sphi 0, %s145
    %s147 = sphi 0, %s145
    %s148 = sphi 0, %s147
    %s162 = sphi 0, %s148
    %s170 = sphi 0, %s172
    %s173 = sphi 0, %s170
    %s174 = sphi 0, %s173
    %s190 = sphi 0, %s174
    %s196 = sphi 0, %s198
    %s199 = sphi 0, %s196
    %s200 = sphi 0, %s199
    %s216 = sphi 0, %s200
    %s224 = sphi 0, %s226
    %s227 = sphi 0, %s224
    %s228 = sphi 0, %s227
    %s244 = sphi 0, %s228
  $region4: #{radar_occupancy_forward.1} parent=0 // loop_header_branch
    %18 = sbr.rel (%p16) target = $region8
  $region5: #{radar_occupancy_forward.1} parent=0 // loop_body
    %s20 = ssub.s32 %s15, 1
    %s21 = ssub.s32 %s15, 2
    %s28 = sadd.s32 1, %s23
    %p29 = scmp.ge.s32.totalorder %s28, 2
    %s30 = scalar_select %p29, 0, %s28
    %s31 = sadd.s32 1, %s22
    %s32 = scalar_select %p29, %s31, %s22
    %p33 = scmp.ge.s32.totalorder %s32, 2
    %s34 = scalar_select %p33, 0, %s32
    %s35 = ssub.s32 %s22, %s34
    %p36 = scmp.eq.s32.totalorder %s35, 0
    %s38 = sadd.s32 %s37, 1
    %s39 = scalar_select %p36, %s37, %s38
    %p42 = pneg %p36
    %p43 = scmp.eq.s32.totalorder %s15, 3
    %p44 = por %p42, %p43
    %p45 = scmp.ne.s32.totalorder %s37, %s40
    %p46 = scmp.eq.s32.totalorder %s15, 0
    %p47 = por %p45, %p46
    %p48 = scmp.ne.s32.totalorder %s37, %s40
    %p49 = scmp.eq.s32.totalorder %s20, 3
    %p50 = por %p48, %p49
    %p51 = scmp.ne.s32.totalorder %s40, %s41
    %p52 = scmp.eq.s32.totalorder %s20, 0
    %p53 = por %p51, %p52
    %p54 = scmp.ne.s32.totalorder %s40, %s41
    %p55 = scmp.eq.s32.totalorder %s21, 3
    %p56 = por %p54, %p55
    %p58 = scmp.ne.s32.totalorder %s41, %s57
    %p59 = scmp.eq.s32.totalorder %s21, 0
    %p60 = por %p58, %p59
    %s62 = sadd.s32 %s61, 1
    %p65 = scmp.eq.s32.totalorder %s15, 3
    %p66 = scmp.ne.s32.totalorder %s61, %s63
    %p67 = scmp.eq.s32.totalorder %s15, 0
    %p68 = por %p66, %p67
    %p69 = scmp.ne.s32.totalorder %s61, %s63
    %p70 = scmp.eq.s32.totalorder %s20, 3
    %p71 = por %p69, %p70
    %p72 = scmp.ne.s32.totalorder %s63, %s64
    %p73 = scmp.eq.s32.totalorder %s20, 0
    %p74 = por %p72, %p73
    %p75 = scmp.ne.s32.totalorder %s63, %s64
    %p76 = scmp.eq.s32.totalorder %s21, 3
    %p77 = por %p75, %p76
    %p79 = scmp.ne.s32.totalorder %s64, %s78
    %p80 = scmp.eq.s32.totalorder %s21, 0
    %p81 = por %p79, %p80
    %s83 = sadd.s32 %s82, 1
    %p86 = scmp.eq.s32.totalorder %s15, 3
    %p87 = scmp.ne.s32.totalorder %s82, %s84
    %p88 = scmp.eq.s32.totalorder %s15, 0
    %p89 = por %p87, %p88
    %p90 = scmp.ne.s32.totalorder %s82, %s84
    %p91 = scmp.eq.s32.totalorder %s20, 3
    %p92 = por %p90, %p91
    %p93 = scmp.ne.s32.totalorder %s84, %s85
    %p94 = scmp.eq.s32.totalorder %s20, 0
    %p95 = por %p93, %p94
    %p96 = scmp.ne.s32.totalorder %s84, %s85
    %p97 = scmp.eq.s32.totalorder %s21, 3
    %p98 = por %p96, %p97
    %p100 = scmp.ne.s32.totalorder %s85, %s99
    %p101 = scmp.eq.s32.totalorder %s21, 0
    %p102 = por %p100, %p101
    %s104 = sadd.s32 %s103, 1
    %p107 = scmp.eq.s32.totalorder %s15, 3
    %p108 = scmp.ne.s32.totalorder %s103, %s105
    %p109 = scmp.eq.s32.totalorder %s15, 0
    %p110 = por %p108, %p109
    %p111 = scmp.ne.s32.totalorder %s103, %s105
    %p112 = scmp.eq.s32.totalorder %s20, 3
    %p113 = por %p111, %p112
    %p114 = scmp.ne.s32.totalorder %s105, %s106
    %p115 = scmp.eq.s32.totalorder %s20, 0
    %p116 = por %p114, %p115
    %p117 = scmp.ne.s32.totalorder %s105, %s106
    %p118 = scmp.eq.s32.totalorder %s21, 3
    %p119 = por %p117, %p118
    %p121 = scmp.ne.s32.totalorder %s106, %s120
    %p122 = scmp.eq.s32.totalorder %s21, 0
    %p123 = por %p121, %p122
    %s125 = sadd.s32 %s124, 1
    %p128 = scmp.eq.s32.totalorder %s15, 3
    %p129 = scmp.ne.s32.totalorder %s124, %s126
    %p130 = scmp.eq.s32.totalorder %s15, 0
    %p131 = por %p129, %p130
    %p132 = scmp.ne.s32.totalorder %s124, %s126
    %p133 = scmp.eq.s32.totalorder %s20, 3
    %p134 = por %p132, %p133
    %p135 = scmp.ne.s32.totalorder %s126, %s127
    %p136 = scmp.eq.s32.totalorder %s20, 0
    %p137 = por %p135, %p136
    %p138 = scmp.ne.s32.totalorder %s126, %s127
    %p139 = scmp.eq.s32.totalorder %s21, 3
    %p140 = por %p138, %p139
    %p142 = scmp.ne.s32.totalorder %s127, %s141
    %p143 = scmp.eq.s32.totalorder %s21, 0
    %p144 = por %p142, %p143
    %s146 = sadd.s32 %s145, 1
    %p149 = scmp.eq.s32.totalorder %s15, 3
    %p150 = scmp.ne.s32.totalorder %s145, %s147
    %p151 = scmp.eq.s32.totalorder %s15, 0
    %p152 = por %p150, %p151
    %p153 = scmp.ne.s32.totalorder %s145, %s147
    %p154 = scmp.eq.s32.totalorder %s20, 3
    %p155 = por %p153, %p154
    %p156 = scmp.ne.s32.totalorder %s147, %s148
    %p157 = scmp.eq.s32.totalorder %s20, 0
    %p158 = por %p156, %p157
    %p159 = scmp.ne.s32.totalorder %s147, %s148
    %p160 = scmp.eq.s32.totalorder %s21, 3
    %p161 = por %p159, %p160
    %p163 = scmp.ne.s32.totalorder %s148, %s162
    %p164 = scmp.eq.s32.totalorder %s21, 0
    %p165 = por %p163, %p164
    %s166 = ssub.s32 %s22, %s34
    %s167 = ssub.s32 %s23, %s30
    %s168 = sor.u32 %s166, %s167
    %p169 = scmp.eq.s32.totalorder %s168, 0
    %s171 = sadd.s32 %s170, 1
    %s172 = scalar_select %p169, %s170, %s171
    %p175 = pneg %p169
    %p176 = scmp.eq.s32.totalorder %s15, 3
    %p177 = por %p175, %p176
    %p178 = scmp.ne.s32.totalorder %s170, %s173
    %p179 = scmp.eq.s32.totalorder %s15, 0
    %p180 = por %p178, %p179
    %p181 = scmp.ne.s32.totalorder %s170, %s173
    %p182 = scmp.eq.s32.totalorder %s20, 3
    %p183 = por %p181, %p182
    %p184 = scmp.ne.s32.totalorder %s173, %s174
    %p185 = scmp.eq.s32.totalorder %s20, 0
    %p186 = por %p184, %p185
    %p187 = scmp.ne.s32.totalorder %s173, %s174
    %p188 = scmp.eq.s32.totalorder %s21, 3
    %p189 = por %p187, %p188
    %p191 = scmp.ne.s32.totalorder %s174, %s190
    %p192 = scmp.eq.s32.totalorder %s21, 0
    %p193 = por %p191, %p192
    %s194 = ssub.s32 %s22, %s34
    %p195 = scmp.eq.s32.totalorder %s194, 0
    %s197 = sadd.s32 %s196, 1
    %s198 = scalar_select %p195, %s196, %s197
    %p201 = pneg %p195
    %p202 = scmp.eq.s32.totalorder %s15, 3
    %p203 = por %p201, %p202
    %p204 = scmp.ne.s32.totalorder %s196, %s199
    %p205 = scmp.eq.s32.totalorder %s15, 0
    %p206 = por %p204, %p205
    %p207 = scmp.ne.s32.totalorder %s196, %s199
    %p208 = scmp.eq.s32.totalorder %s20, 3
    %p209 = por %p207, %p208
    %p210 = scmp.ne.s32.totalorder %s199, %s200
    %p211 = scmp.eq.s32.totalorder %s20, 0
    %p212 = por %p210, %p211
    %p213 = scmp.ne.s32.totalorder %s199, %s200
    %p214 = scmp.eq.s32.totalorder %s21, 3
    %p215 = por %p213, %p214
    %p217 = scmp.ne.s32.totalorder %s200, %s216
    %p218 = scmp.eq.s32.totalorder %s21, 0
    %p219 = por %p217, %p218
    %s220 = ssub.s32 %s22, %s34
    %s221 = ssub.s32 %s23, %s30
    %s222 = sor.u32 %s220, %s221
    %p223 = scmp.eq.s32.totalorder %s222, 0
    %s225 = sadd.s32 %s224, 1
    %s226 = scalar_select %p223, %s224, %s225
    %p229 = pneg %p223
    %p230 = scmp.eq.s32.totalorder %s15, 3
    %p231 = por %p229, %p230
    %p232 = scmp.ne.s32.totalorder %s224, %s227
    %p233 = scmp.eq.s32.totalorder %s15, 0
    %p234 = por %p232, %p233
    %p235 = scmp.ne.s32.totalorder %s224, %s227
    %p236 = scmp.eq.s32.totalorder %s20, 3
    %p237 = por %p235, %p236
    %p238 = scmp.ne.s32.totalorder %s227, %s228
    %p239 = scmp.eq.s32.totalorder %s20, 0
    %p240 = por %p238, %p239
    %p241 = scmp.ne.s32.totalorder %s227, %s228
    %p242 = scmp.eq.s32.totalorder %s21, 3
    %p243 = por %p241, %p242
    %p245 = scmp.ne.s32.totalorder %s228, %s244
    %p246 = scmp.eq.s32.totalorder %s21, 0
    %p247 = por %p245, %p246
    %p248 = scmp.le.s32.totalorder 1, %s15
    %p249 = scmp.lt.s32.totalorder %s15, 5
    %p250 = pnand %p248, %p249
    %p251 = pneg %p250
    // Predicated region
    $region9: #{radar_occupancy_forward.1} parent=5 // pred_check
      _
    $region10: #{radar_occupancy_forward.1} parent=5 // pred_check_branch
      %253 = sbr.rel (%p250) target = $region12
    $region11: #{radar_occupancy_forward.1} parent=5 // pred_region
      %s254 = ssub.s32 %s15, 1
      // Predicated region
      $region13: #{radar_occupancy_forward.1} parent=11 // pred_check
        %p255 = pneg %p74
      $region14: #{radar_occupancy_forward.1} parent=11 // pred_check_branch
        %257 = sbr.rel (%p255) target = $region16
      $region15: #{radar_occupancy_forward.1} parent=11 // pred_region
        _
      $region16: #{radar_occupancy_forward.1} parent=11 // pred_fallthru
        _
      // Predicated region
      $region17: #{radar_occupancy_forward.1} parent=11 // pred_check
        %p258 = pneg %p95
      $region18: #{radar_occupancy_forward.1} parent=11 // pred_check_branch
        %260 = sbr.rel (%p258) target = $region20
      $region19: #{radar_occupancy_forward.1} parent=11 // pred_region
        _
      $region20: #{radar_occupancy_forward.1} parent=11 // pred_fallthru
        _
      // Predicated region
      $region21: #{radar_occupancy_forward.1} parent=11 // pred_check
        %p261 = pneg %p116
      $region22: #{radar_occupancy_forward.1} parent=11 // pred_check_branch
        %263 = sbr.rel (%p261) target = $region24
      $region23: #{radar_occupancy_forward.1} parent=11 // pred_region
        _
      $region24: #{radar_occupancy_forward.1} parent=11 // pred_fallthru
        _
      // Predicated region
      $region25: #{radar_occupancy_forward.1} parent=11 // pred_check
        %p264 = pneg %p137
      $region26: #{radar_occupancy_forward.1} parent=11 // pred_check_branch
        %266 = sbr.rel (%p264) target = $region28
      $region27: #{radar_occupancy_forward.1} parent=11 // pred_region
        _
      $region28: #{radar_occupancy_forward.1} parent=11 // pred_fallthru
        _
      // Predicated region
      $region29: #{radar_occupancy_forward.1} parent=11 // pred_check
        %p267 = pneg %p158
      $region30: #{radar_occupancy_forward.1} parent=11 // pred_check_branch
        %269 = sbr.rel (%p267) target = $region32
      $region31: #{radar_occupancy_forward.1} parent=11 // pred_region
        _
      $region32: #{radar_occupancy_forward.1} parent=11 // pred_fallthru
        _
    $region12: #{radar_occupancy_forward.1} parent=5 // pred_fallthru
      _
    %p270 = scmp.lt.s32.totalorder %s15, 4
    // Predicated region
    $region33: #{radar_occupancy_forward.1} parent=5 // pred_check
      %p271 = pneg %p270
    $region34: #{radar_occupancy_forward.1} parent=5 // pred_check_branch
      %273 = sbr.rel (%p271) target = $region36
    $region35: #{radar_occupancy_forward.1} parent=5 // pred_region
      // Predicated region
      $region37: #{radar_occupancy_forward.1} parent=35 // pred_check
        %p274 = pneg %p47
      $region38: #{radar_occupancy_forward.1} parent=35 // pred_check_branch
        %276 = sbr.rel (%p274) target = $region40
      $region39: #{radar_occupancy_forward.1} parent=35 // pred_region
        %p277 = scmp.lt.s32.totalorder %s22, 1
        %s278 = scalar_select %p277, %s22, 1
        %s279 = smul.addr %s278, 6
        %s280 = smul.addr %s279, 8
        %s281 = scalar_lea.vmem %s0, %s280
      $region40: #{radar_occupancy_forward.1} parent=35 // pred_fallthru
        _
      // Predicated region
      $region41: #{radar_occupancy_forward.1} parent=35 // pred_check
        %p282 = pneg %p180
      $region42: #{radar_occupancy_forward.1} parent=35 // pred_check_branch
        %284 = sbr.rel (%p282) target = $region44
      $region43: #{radar_occupancy_forward.1} parent=35 // pred_region
        %s285 = smul.u32 2, %s23
        %p286 = scmp.lt.s32.totalorder %s22, 1
        %s287 = scalar_select %p286, %s22, 1
        %p288 = scmp.lt.s32.totalorder %s285, 3
        %s289 = scalar_select %p288, %s285, 3
        %s290 = smul.addr %s289, 2
        %s291 = smul.addr %s287, 8
        %s292 = sadd.s32 %s290, %s291
        %s293 = smul.addr %s292, 8
        %s294 = scalar_lea.vmem %s6, %s293
        %s295 = smul.u32 2, %s23
      $region44: #{radar_occupancy_forward.1} parent=35 // pred_fallthru
        _
    $region36: #{radar_occupancy_forward.1} parent=5 // pred_fallthru
      _
    %p296 = scmp.le.s32.totalorder 1, %s15
    %p297 = scmp.lt.s32.totalorder %s15, 5
    %p298 = pnand %p296, %p297
    %p299 = pneg %p298
    // Predicated region
    $region45: #{radar_occupancy_forward.1} parent=5 // pred_check
      _
    $region46: #{radar_occupancy_forward.1} parent=5 // pred_check_branch
      %301 = sbr.rel (%p298) target = $region48
    $region47: #{radar_occupancy_forward.1} parent=5 // pred_region
      %s302 = ssub.s32 %s15, 1
      %p303 = scmp.lt.s32.totalorder %s24, 1
      %s304 = scalar_select %p303, %s24, 1
      %s305 = smul.addr %s304, 6
      %s306 = smul.addr %s305, 8
      %s307 = scalar_lea.vmem %s0, %s306
      %p308 = pneg %p53
      %p309 = pneg %p50
      %p310 = pneg %p74
      %p311 = pneg %p71
      %p312 = pneg %p95
      %p313 = pneg %p92
      %p314 = pneg %p116
      %p315 = pneg %p113
      %p316 = pneg %p137
      %p317 = pneg %p134
      %p318 = pneg %p158
      %p319 = pneg %p155
      %s320 = smul.u32 2, %s25
      %p321 = scmp.lt.s32.totalorder %s24, 1
      %s322 = scalar_select %p321, %s24, 1
      %p323 = scmp.lt.s32.totalorder %s320, 3
      %s324 = scalar_select %p323, %s320, 3
      %s325 = smul.addr %s324, 2
      %s326 = smul.addr %s322, 8
      %s327 = sadd.s32 %s325, %s326
      %s328 = smul.addr %s327, 8
      %s329 = scalar_lea.vmem %s6, %s328
      %p330 = pneg %p186
      %p331 = pneg %p183
      %p332 = pneg %p212
      %p333 = pneg %p209
      %p334 = scmp.lt.s32.totalorder %s24, 1
      %s335 = scalar_select %p334, %s24, 1
      %s336 = smul.addr %s335, 2
      %s337 = smul.addr %s336, 8
      %s338 = scalar_lea.vmem %s7, %s337
      %p339 = pneg %p240
      %p340 = pneg %p237
      %s341 = smul.u32 2, %s25
      %p342 = scmp.lt.s32.totalorder %s24, 1
      %s343 = scalar_select %p342, %s24, 1
      %p344 = scmp.lt.s32.totalorder %s341, 3
      %s345 = scalar_select %p344, %s341, 3
      %s346 = smul.addr %s345, 2
      %s347 = smul.addr %s343, 8
      %s348 = sadd.s32 %s346, %s347
      %s349 = smul.addr %s348, 8
      %s350 = scalar_lea.vmem %s8, %s349
      %p351 = scmp.lt.s32.totalorder %s24, 1
      %s352 = scalar_select %p351, %s24, 1
      %s353 = smul.addr %s352, 6
      %s354 = smul.addr %s353, 8
      %s355 = scalar_lea.vmem %s0, %s354
      %s356 = smul.u32 2, %s25
      %p357 = scmp.lt.s32.totalorder %s24, 1
      %s358 = scalar_select %p357, %s24, 1
      %p359 = scmp.lt.s32.totalorder %s356, 3
      %s360 = scalar_select %p359, %s356, 3
      %s361 = smul.addr %s360, 2
      %s362 = smul.addr %s358, 8
      %s363 = sadd.s32 %s361, %s362
      %s364 = smul.addr %s363, 8
      %s365 = scalar_lea.vmem %s6, %s364
      %s366 = smul.u32 2, %s25
      %p367 = scmp.lt.s32.totalorder %s24, 1
      %s368 = scalar_select %p367, %s24, 1
      %s369 = smul.addr %s368, 2
      %s370 = smul.addr %s369, 8
      %s371 = scalar_lea.vmem %s7, %s370
      %s372 = smul.u32 2, %s25
      %p373 = scmp.lt.s32.totalorder %s24, 1
      %s374 = scalar_select %p373, %s24, 1
      %p375 = scmp.lt.s32.totalorder %s372, 3
      %s376 = scalar_select %p375, %s372, 3
      %s377 = smul.addr %s376, 2
      %s378 = smul.addr %s374, 8
      %s379 = sadd.s32 %s377, %s378
      %s380 = smul.addr %s379, 8
      %s381 = scalar_lea.vmem %s8, %s380
      %s382 = smul.u32 2, %s25
      %p383 = scmp.eq.s32.totalorder %s25, 0
      // Predicated region
      $region49: #{radar_occupancy_forward.1} parent=47 // pred_check
        %p384 = pneg %p383
      $region50: #{radar_occupancy_forward.1} parent=47 // pred_check_branch
        %386 = sbr.rel (%p384) target = $region52
      $region51: #{radar_occupancy_forward.1} parent=47 // pred_region
        %v387 = vld [vmem:[%s2] sm:$0xff]
        %v388 = vld [vmem:[%s355] sm:$0xff]
        %v389 = vld [vmem:[%s355 + $0x8] sm:$0xff]
        %v390 = vld [vmem:[%s355 + $0x18] sm:$0xff]
        %v391 = vld [vmem:[%s355 + $0x20] sm:$0xff]
        %s392 = scalar_lea.vmem %s2, 24
        %v393 = vld [vmem:[%s392] sm:$0xff]
        %v394 = vld [vmem:[%s355 + $0x10] sm:$0xff]
        %v395 = vld [vmem:[%s355 + $0x28] sm:$0xff]
        %402 = vrot.lane.b32.xlu0 %v388, 112
        %v403 = vpop.permute.xlu0 %402
        %404 = vrot.lane.b32.xlu0 %v389, 112
        %v405 = vpop.permute.xlu0 %404
        %406 = vrot.lane.b32.xlu0 %v394, 112
        %v407 = vpop.permute.xlu0 %406
        %408 = vrot.lane.b32.xlu0 %v390, 112
        %v409 = vpop.permute.xlu0 %408
        %410 = vrot.lane.b32.xlu0 %v391, 112
        %v411 = vpop.permute.xlu0 %410
        %412 = vrot.lane.b32.xlu0 %v395, 112
        %v413 = vpop.permute.xlu0 %412
        %vm414 = vcmask 916480
        %v415 = vsel %vm414, %v403, %v405
        %v416 = vsel %vm414, %v405, %v407
        %v417 = vsel %vm414, %v409, %v411
        %v418 = vsel %vm414, %v411, %v413
        %vm423 = vcmask 130048
        %v425 = vsel %vm423, %v393, 0
        %427 = vmatpush.msra.mxu0 0.0
        %428 = vmatpush.msra.mxu0 0.0
        %429 = vmatpush.msra.mxu0 0.0
        %430 = vmatpush.msra.mxu0 0.0
        %431 = vmatpush.msra.mxu0 0.0
        %432 = vmatpush.msra.mxu0 0.0
        %433 = vmatpush.msra.mxu0 0.0
        %434 = vmatpush.msra.mxu0 0.0
        %435 = vmatpush.msra.mxu0 0.0
        %436 = vmatpush.msra.mxu0 0.0
        %437 = vmatpush.msra.mxu0 0.0
        %438 = vmatpush.msra.mxu0 0.0
        %439 = vmatpush.msra.mxu0 0.0
        %440 = vmatpush.msra.mxu0 0.0
        %441 = vmatpush.msra.mxu0 %v417
        %442 = vmatpush.msra.mxu0 %v415
        %443 = vmatmul.f32.gmra.mxu0 %v425
        %v444 = vpop.f32.mrf.mxu0
        %v445 = vadd.f32 0.0, %v444
        %446 = vdwg.mxu0
        %447 = vmatpush.msra.mxu0 0.0
        %448 = vmatpush.msra.mxu0 0.0
        %449 = vmatpush.msra.mxu0 0.0
        %450 = vmatpush.msra.mxu0 0.0
        %451 = vmatpush.msra.mxu0 0.0
        %452 = vmatpush.msra.mxu0 0.0
        %453 = vmatpush.msra.mxu0 0.0
        %454 = vmatpush.msra.mxu0 0.0
        %455 = vmatpush.msra.mxu0 0.0
        %456 = vmatpush.msra.mxu0 0.0
        %457 = vmatpush.msra.mxu0 0.0
        %458 = vmatpush.msra.mxu0 0.0
        %459 = vmatpush.msra.mxu0 0.0
        %460 = vmatpush.msra.mxu0 0.0
        %461 = vmatpush.msra.mxu0 %v418
        %462 = vmatpush.msra.mxu0 %v416
        %463 = vmatmul.f32.gmra.mxu0 %v425
        %v464 = vpop.f32.mrf.mxu0
        %v465 = vadd.f32 0.0, %v464
        %466 = vdwg.mxu0
        %v468 = vsel %vm423, %v387, 0
        %470 = vmatpush.msra.mxu0 0.0
        %471 = vmatpush.msra.mxu0 0.0
        %472 = vmatpush.msra.mxu0 0.0
        %473 = vmatpush.msra.mxu0 0.0
        %474 = vmatpush.msra.mxu0 0.0
        %475 = vmatpush.msra.mxu0 0.0
        %476 = vmatpush.msra.mxu0 0.0
        %477 = vmatpush.msra.mxu0 0.0
        %478 = vmatpush.msra.mxu0 0.0
        %479 = vmatpush.msra.mxu0 0.0
        %480 = vmatpush.msra.mxu0 0.0
        %481 = vmatpush.msra.mxu0 0.0
        %482 = vmatpush.msra.mxu0 0.0
        %483 = vmatpush.msra.mxu0 0.0
        %484 = vmatpush.msra.mxu0 %v390
        %485 = vmatpush.msra.mxu0 %v388
        %486 = vmatmul.f32.gmra.mxu0 %v468
        %v487 = vpop.f32.mrf.mxu0
        %v488 = vadd.f32 %v445, %v487
        %489 = vdwg.mxu0
        %490 = vmatpush.msra.mxu0 0.0
        %491 = vmatpush.msra.mxu0 0.0
        %492 = vmatpush.msra.mxu0 0.0
        %493 = vmatpush.msra.mxu0 0.0
        %494 = vmatpush.msra.mxu0 0.0
        %495 = vmatpush.msra.mxu0 0.0
        %496 = vmatpush.msra.mxu0 0.0
        %497 = vmatpush.msra.mxu0 0.0
        %498 = vmatpush.msra.mxu0 0.0
        %499 = vmatpush.msra.mxu0 0.0
        %500 = vmatpush.msra.mxu0 0.0
        %501 = vmatpush.msra.mxu0 0.0
        %502 = vmatpush.msra.mxu0 0.0
        %503 = vmatpush.msra.mxu0 0.0
        %504 = vmatpush.msra.mxu0 %v391
        %505 = vmatpush.msra.mxu0 %v389
        %506 = vmatmul.f32.gmra.mxu0 %v468
        %v507 = vpop.f32.mrf.mxu0
        %v508 = vadd.f32 %v465, %v507
        %509 = vdwg.mxu0
        %s510 = scalar_lea.vmem %s2, 48
        %v511 = vld [vmem:[%s510] sm:$0xff]
        %512 = vrot.lane.b32.xlu0 %v388, 96
        %v513 = vpop.permute.xlu0 %512
        %514 = vrot.lane.b32.xlu0 %v389, 96
        %v515 = vpop.permute.xlu0 %514
        %516 = vrot.lane.b32.xlu0 %v394, 96
        %v517 = vpop.permute.xlu0 %516
        %518 = vrot.lane.b32.xlu0 %v390, 96
        %v519 = vpop.permute.xlu0 %518
        %520 = vrot.lane.b32.xlu0 %v391, 96
        %v521 = vpop.permute.xlu0 %520
        %522 = vrot.lane.b32.xlu0 %v395, 96
        %v523 = vpop.permute.xlu0 %522
        %vm524 = vcmask 785408
        %v525 = vsel %vm524, %v513, %v515
        %v526 = vsel %vm524, %v515, %v517
        %v527 = vsel %vm524, %v519, %v521
        %v528 = vsel %vm524, %v521, %v523
        %v534 = vsel %vm423, %v511, 0
        %536 = vmatpush.msra.mxu0 0.0
        %537 = vmatpush.msra.mxu0 0.0
        %538 = vmatpush.msra.mxu0 0.0
        %539 = vmatpush.msra.mxu0 0.0
        %540 = vmatpush.msra.mxu0 0.0
        %541 = vmatpush.msra.mxu0 0.0
        %542 = vmatpush.msra.mxu0 0.0
        %543 = vmatpush.msra.mxu0 0.0
        %544 = vmatpush.msra.mxu0 0.0
        %545 = vmatpush.msra.mxu0 0.0
        %546 = vmatpush.msra.mxu0 0.0
        %547 = vmatpush.msra.mxu0 0.0
        %548 = vmatpush.msra.mxu0 0.0
        %549 = vmatpush.msra.mxu0 0.0
        %550 = vmatpush.msra.mxu0 %v527
        %551 = vmatpush.msra.mxu0 %v525
        %552 = vmatmul.f32.gmra.mxu0 %v534
        %v553 = vpop.f32.mrf.mxu0
        %v554 = vadd.f32 0.0, %v553
        %555 = vdwg.mxu0
        %556 = vmatpush.msra.mxu0 0.0
        %557 = vmatpush.msra.mxu0 0.0
        %558 = vmatpush.msra.mxu0 0.0
        %559 = vmatpush.msra.mxu0 0.0
        %560 = vmatpush.msra.mxu0 0.0
        %561 = vmatpush.msra.mxu0 0.0
        %562 = vmatpush.msra.mxu0 0.0
        %563 = vmatpush.msra.mxu0 0.0
        %564 = vmatpush.msra.mxu0 0.0
        %565 = vmatpush.msra.mxu0 0.0
        %566 = vmatpush.msra.mxu0 0.0
        %567 = vmatpush.msra.mxu0 0.0
        %568 = vmatpush.msra.mxu0 0.0
        %569 = vmatpush.msra.mxu0 0.0
        %570 = vmatpush.msra.mxu0 %v528
        %571 = vmatpush.msra.mxu0 %v526
        %572 = vmatmul.f32.gmra.mxu0 %v534
        %v573 = vpop.f32.mrf.mxu0
        %v574 = vadd.f32 0.0, %v573
        %575 = vdwg.mxu0
        %v576 = vadd.f32 %v488, %v554
        %v577 = vadd.f32 %v508, %v574
        %v578 = vld [vmem:[%s1] ss:$2 sm:$0x3]
        %v580 = vperm.slane %v578, 0
        %v581 = vperm.slane %v578, 1
        %v584 = vmul.f32 %v576, %v580
        %v585 = vmul.f32 %v577, %v581
        %v586 = vadd.f32 %v584, 0.0
        %v587 = vadd.f32 %v585, 0.0
        %s588 = scalar_lea.vmem %s2, 8
        %v589 = vld [vmem:[%s588] sm:$0xff]
        %s590 = scalar_lea.vmem %s2, 32
        %v591 = vld [vmem:[%s590] sm:$0xff]
        %592 = vrot.lane.b32.xlu0 %v388, 111
        %v593 = vpop.permute.xlu0 %592
        %594 = vrot.lane.b32.xlu0 %v389, 111
        %v595 = vpop.permute.xlu0 %594
        %596 = vrot.lane.b32.xlu0 %v394, 111
        %v597 = vpop.permute.xlu0 %596
        %598 = vrot.lane.b32.xlu0 %v390, 111
        %v599 = vpop.permute.xlu0 %598
        %600 = vrot.lane.b32.xlu0 %v391, 111
        %v601 = vpop.permute.xlu0 %600
        %602 = vrot.lane.b32.xlu0 %v395, 111
        %v603 = vpop.permute.xlu0 %602
        %vm604 = vcmask 908288
        %v605 = vsel %vm604, %v593, %v595
        %v606 = vsel %vm604, %v595, %v597
        %v607 = vsel %vm604, %v599, %v601
        %v608 = vsel %vm604, %v601, %v603
        %v614 = vsel %vm423, %v591, 0
        %616 = vmatpush.msra.mxu0 0.0
        %617 = vmatpush.msra.mxu0 0.0
        %618 = vmatpush.msra.mxu0 0.0
        %619 = vmatpush.msra.mxu0 0.0
        %620 = vmatpush.msra.mxu0 0.0
        %621 = vmatpush.msra.mxu0 0.0
        %622 = vmatpush.msra.mxu0 0.0
        %623 = vmatpush.msra.mxu0 0.0
        %624 = vmatpush.msra.mxu0 0.0
        %625 = vmatpush.msra.mxu0 0.0
        %626 = vmatpush.msra.mxu0 0.0
        %627 = vmatpush.msra.mxu0 0.0
        %628 = vmatpush.msra.mxu0 0.0
        %629 = vmatpush.msra.mxu0 0.0
        %630 = vmatpush.msra.mxu0 %v607
        %631 = vmatpush.msra.mxu0 %v605
        %632 = vmatmul.f32.gmra.mxu0 %v614
        %v633 = vpop.f32.mrf.mxu0
        %v634 = vadd.f32 0.0, %v633
        %635 = vdwg.mxu0
        %636 = vmatpush.msra.mxu0 0.0
        %637 = vmatpush.msra.mxu0 0.0
        %638 = vmatpush.msra.mxu0 0.0
        %639 = vmatpush.msra.mxu0 0.0
        %640 = vmatpush.msra.mxu0 0.0
        %641 = vmatpush.msra.mxu0 0.0
        %642 = vmatpush.msra.mxu0 0.0
        %643 = vmatpush.msra.mxu0 0.0
        %644 = vmatpush.msra.mxu0 0.0
        %645 = vmatpush.msra.mxu0 0.0
        %646 = vmatpush.msra.mxu0 0.0
        %647 = vmatpush.msra.mxu0 0.0
        %648 = vmatpush.msra.mxu0 0.0
        %649 = vmatpush.msra.mxu0 0.0
        %650 = vmatpush.msra.mxu0 %v608
        %651 = vmatpush.msra.mxu0 %v606
        %652 = vmatmul.f32.gmra.mxu0 %v614
        %v653 = vpop.f32.mrf.mxu0
        %v654 = vadd.f32 0.0, %v653
        %655 = vdwg.mxu0
        %656 = vrot.lane.b32.xlu0 %v388, 127
        %v657 = vpop.permute.xlu0 %656
        %658 = vrot.lane.b32.xlu0 %v389, 127
        %v659 = vpop.permute.xlu0 %658
        %660 = vrot.lane.b32.xlu0 %v394, 127
        %v661 = vpop.permute.xlu0 %660
        %662 = vrot.lane.b32.xlu0 %v390, 127
        %v663 = vpop.permute.xlu0 %662
        %664 = vrot.lane.b32.xlu0 %v391, 127
        %v665 = vpop.permute.xlu0 %664
        %666 = vrot.lane.b32.xlu0 %v395, 127
        %v667 = vpop.permute.xlu0 %666
        %vm668 = vcmask 1039360
        %v669 = vsel %vm668, %v657, %v659
        %v670 = vsel %vm668, %v659, %v661
        %v671 = vsel %vm668, %v663, %v665
        %v672 = vsel %vm668, %v665, %v667
        %v678 = vsel %vm423, %v589, 0
        %680 = vmatpush.msra.mxu0 0.0
        %681 = vmatpush.msra.mxu0 0.0
        %682 = vmatpush.msra.mxu0 0.0
        %683 = vmatpush.msra.mxu0 0.0
        %684 = vmatpush.msra.mxu0 0.0
        %685 = vmatpush.msra.mxu0 0.0
        %686 = vmatpush.msra.mxu0 0.0
        %687 = vmatpush.msra.mxu0 0.0
        %688 = vmatpush.msra.mxu0 0.0
        %689 = vmatpush.msra.mxu0 0.0
        %690 = vmatpush.msra.mxu0 0.0
        %691 = vmatpush.msra.mxu0 0.0
        %692 = vmatpush.msra.mxu0 0.0
        %693 = vmatpush.msra.mxu0 0.0
        %694 = vmatpush.msra.mxu0 %v671
        %695 = vmatpush.msra.mxu0 %v669
        %696 = vmatmul.f32.gmra.mxu0 %v678
        %v697 = vpop.f32.mrf.mxu0
        %v698 = vadd.f32 %v634, %v697
        %699 = vdwg.mxu0
        %700 = vmatpush.msra.mxu0 0.0
        %701 = vmatpush.msra.mxu0 0.0
        %702 = vmatpush.msra.mxu0 0.0
        %703 = vmatpush.msra.mxu0 0.0
        %704 = vmatpush.msra.mxu0 0.0
        %705 = vmatpush.msra.mxu0 0.0
        %706 = vmatpush.msra.mxu0 0.0
        %707 = vmatpush.msra.mxu0 0.0
        %708 = vmatpush.msra.mxu0 0.0
        %709 = vmatpush.msra.mxu0 0.0
        %710 = vmatpush.msra.mxu0 0.0
        %711 = vmatpush.msra.mxu0 0.0
        %712 = vmatpush.msra.mxu0 0.0
        %713 = vmatpush.msra.mxu0 0.0
        %714 = vmatpush.msra.mxu0 %v672
        %715 = vmatpush.msra.mxu0 %v670
        %716 = vmatmul.f32.gmra.mxu0 %v678
        %v717 = vpop.f32.mrf.mxu0
        %v718 = vadd.f32 %v654, %v717
        %719 = vdwg.mxu0
        %s720 = scalar_lea.vmem %s2, 56
        %v721 = vld [vmem:[%s720] sm:$0xff]
        %722 = vrot.lane.b32.xlu0 %v388, 95
        %v723 = vpop.permute.xlu0 %722
        %724 = vrot.lane.b32.xlu0 %v389, 95
        %v725 = vpop.permute.xlu0 %724
        %726 = vrot.lane.b32.xlu0 %v394, 95
        %v727 = vpop.permute.xlu0 %726
        %728 = vrot.lane.b32.xlu0 %v390, 95
        %v729 = vpop.permute.xlu0 %728
        %730 = vrot.lane.b32.xlu0 %v391, 95
        %v731 = vpop.permute.xlu0 %730
        %732 = vrot.lane.b32.xlu0 %v395, 95
        %v733 = vpop.permute.xlu0 %732
        %vm734 = vcmask 777216
        %v735 = vsel %vm734, %v723, %v725
        %v736 = vsel %vm734, %v725, %v727
        %v737 = vsel %vm734, %v729, %v731
        %v738 = vsel %vm734, %v731, %v733
        %v744 = vsel %vm423, %v721, 0
        %746 = vmatpush.msra.mxu0 0.0
        %747 = vmatpush.msra.mxu0 0.0
        %748 = vmatpush.msra.mxu0 0.0
        %749 = vmatpush.msra.mxu0 0.0
        %750 = vmatpush.msra.mxu0 0.0
        %751 = vmatpush.msra.mxu0 0.0
        %752 = vmatpush.msra.mxu0 0.0
        %753 = vmatpush.msra.mxu0 0.0
        %754 = vmatpush.msra.mxu0 0.0
        %755 = vmatpush.msra.mxu0 0.0
        %756 = vmatpush.msra.mxu0 0.0
        %757 = vmatpush.msra.mxu0 0.0
        %758 = vmatpush.msra.mxu0 0.0
        %759 = vmatpush.msra.mxu0 0.0
        %760 = vmatpush.msra.mxu0 %v737
        %761 = vmatpush.msra.mxu0 %v735
        %762 = vmatmul.f32.gmra.mxu0 %v744
        %v763 = vpop.f32.mrf.mxu0
        %v764 = vadd.f32 0.0, %v763
        %765 = vdwg.mxu0
        %766 = vmatpush.msra.mxu0 0.0
        %767 = vmatpush.msra.mxu0 0.0
        %768 = vmatpush.msra.mxu0 0.0
        %769 = vmatpush.msra.mxu0 0.0
        %770 = vmatpush.msra.mxu0 0.0
        %771 = vmatpush.msra.mxu0 0.0
        %772 = vmatpush.msra.mxu0 0.0
        %773 = vmatpush.msra.mxu0 0.0
        %774 = vmatpush.msra.mxu0 0.0
        %775 = vmatpush.msra.mxu0 0.0
        %776 = vmatpush.msra.mxu0 0.0
        %777 = vmatpush.msra.mxu0 0.0
        %778 = vmatpush.msra.mxu0 0.0
        %779 = vmatpush.msra.mxu0 0.0
        %780 = vmatpush.msra.mxu0 %v738
        %781 = vmatpush.msra.mxu0 %v736
        %782 = vmatmul.f32.gmra.mxu0 %v744
        %v783 = vpop.f32.mrf.mxu0
        %v784 = vadd.f32 0.0, %v783
        %785 = vdwg.mxu0
        %v786 = vadd.f32 %v698, %v764
        %v787 = vadd.f32 %v718, %v784
        %v788 = vadd.f32 %v586, %v786
        %v789 = vadd.f32 %v587, %v787
        %s790 = scalar_lea.vmem %s2, 16
        %v791 = vld [vmem:[%s790] sm:$0xff]
        %s792 = scalar_lea.vmem %s2, 40
        %v793 = vld [vmem:[%s792] sm:$0xff]
        %794 = vrot.lane.b32.xlu0 %v388, 110
        %v795 = vpop.permute.xlu0 %794
        %796 = vrot.lane.b32.xlu0 %v389, 110
        %v797 = vpop.permute.xlu0 %796
        %798 = vrot.lane.b32.xlu0 %v394, 110
        %v799 = vpop.permute.xlu0 %798
        %800 = vrot.lane.b32.xlu0 %v390, 110
        %v801 = vpop.permute.xlu0 %800
        %802 = vrot.lane.b32.xlu0 %v391, 110
        %v803 = vpop.permute.xlu0 %802
        %804 = vrot.lane.b32.xlu0 %v395, 110
        %v805 = vpop.permute.xlu0 %804
        %vm806 = vcmask 900096
        %v807 = vsel %vm806, %v795, %v797
        %v808 = vsel %vm806, %v797, %v799
        %v809 = vsel %vm806, %v801, %v803
        %v810 = vsel %vm806, %v803, %v805
        %v816 = vsel %vm423, %v793, 0
        %818 = vmatpush.msra.mxu0 0.0
        %819 = vmatpush.msra.mxu0 0.0
        %820 = vmatpush.msra.mxu0 0.0
        %821 = vmatpush.msra.mxu0 0.0
        %822 = vmatpush.msra.mxu0 0.0
        %823 = vmatpush.msra.mxu0 0.0
        %824 = vmatpush.msra.mxu0 0.0
        %825 = vmatpush.msra.mxu0 0.0
        %826 = vmatpush.msra.mxu0 0.0
        %827 = vmatpush.msra.mxu0 0.0
        %828 = vmatpush.msra.mxu0 0.0
        %829 = vmatpush.msra.mxu0 0.0
        %830 = vmatpush.msra.mxu0 0.0
        %831 = vmatpush.msra.mxu0 0.0
        %832 = vmatpush.msra.mxu0 %v809
        %833 = vmatpush.msra.mxu0 %v807
        %834 = vmatmul.f32.gmra.mxu0 %v816
        %v835 = vpop.f32.mrf.mxu0
        %v836 = vadd.f32 0.0, %v835
        %837 = vdwg.mxu0
        %838 = vmatpush.msra.mxu0 0.0
        %839 = vmatpush.msra.mxu0 0.0
        %840 = vmatpush.msra.mxu0 0.0
        %841 = vmatpush.msra.mxu0 0.0
        %842 = vmatpush.msra.mxu0 0.0
        %843 = vmatpush.msra.mxu0 0.0
        %844 = vmatpush.msra.mxu0 0.0
        %845 = vmatpush.msra.mxu0 0.0
        %846 = vmatpush.msra.mxu0 0.0
        %847 = vmatpush.msra.mxu0 0.0
        %848 = vmatpush.msra.mxu0 0.0
        %849 = vmatpush.msra.mxu0 0.0
        %850 = vmatpush.msra.mxu0 0.0
        %851 = vmatpush.msra.mxu0 0.0
        %852 = vmatpush.msra.mxu0 %v810
        %853 = vmatpush.msra.mxu0 %v808
        %854 = vmatmul.f32.gmra.mxu0 %v816
        %v855 = vpop.f32.mrf.mxu0
        %v856 = vadd.f32 0.0, %v855
        %857 = vdwg.mxu0
        %858 = vrot.lane.b32.xlu0 %v388, 126
        %v859 = vpop.permute.xlu0 %858
        %860 = vrot.lane.b32.xlu0 %v389, 126
        %v861 = vpop.permute.xlu0 %860
        %862 = vrot.lane.b32.xlu0 %v394, 126
        %v863 = vpop.permute.xlu0 %862
        %864 = vrot.lane.b32.xlu0 %v390, 126
        %v865 = vpop.permute.xlu0 %864
        %866 = vrot.lane.b32.xlu0 %v391, 126
        %v867 = vpop.permute.xlu0 %866
        %868 = vrot.lane.b32.xlu0 %v395, 126
        %v869 = vpop.permute.xlu0 %868
        %vm870 = vcmask 1031168
        %v871 = vsel %vm870, %v859, %v861
        %v872 = vsel %vm870, %v861, %v863
        %v873 = vsel %vm870, %v865, %v867
        %v874 = vsel %vm870, %v867, %v869
        %v880 = vsel %vm423, %v791, 0
        %882 = vmatpush.msra.mxu0 0.0
        %883 = vmatpush.msra.mxu0 0.0
        %884 = vmatpush.msra.mxu0 0.0
        %885 = vmatpush.msra.mxu0 0.0
        %886 = vmatpush.msra.mxu0 0.0
        %887 = vmatpush.msra.mxu0 0.0
        %888 = vmatpush.msra.mxu0 0.0
        %889 = vmatpush.msra.mxu0 0.0
        %890 = vmatpush.msra.mxu0 0.0
        %891 = vmatpush.msra.mxu0 0.0
        %892 = vmatpush.msra.mxu0 0.0
        %893 = vmatpush.msra.mxu0 0.0
        %894 = vmatpush.msra.mxu0 0.0
        %895 = vmatpush.msra.mxu0 0.0
        %896 = vmatpush.msra.mxu0 %v873
        %897 = vmatpush.msra.mxu0 %v871
        %898 = vmatmul.f32.gmra.mxu0 %v880
        %v899 = vpop.f32.mrf.mxu0
        %v900 = vadd.f32 %v836, %v899
        %901 = vdwg.mxu0
        %902 = vmatpush.msra.mxu0 0.0
        %903 = vmatpush.msra.mxu0 0.0
        %904 = vmatpush.msra.mxu0 0.0
        %905 = vmatpush.msra.mxu0 0.0
        %906 = vmatpush.msra.mxu0 0.0
        %907 = vmatpush.msra.mxu0 0.0
        %908 = vmatpush.msra.mxu0 0.0
        %909 = vmatpush.msra.mxu0 0.0
        %910 = vmatpush.msra.mxu0 0.0
        %911 = vmatpush.msra.mxu0 0.0
        %912 = vmatpush.msra.mxu0 0.0
        %913 = vmatpush.msra.mxu0 0.0
        %914 = vmatpush.msra.mxu0 0.0
        %915 = vmatpush.msra.mxu0 0.0
        %916 = vmatpush.msra.mxu0 %v874
        %917 = vmatpush.msra.mxu0 %v872
        %918 = vmatmul.f32.gmra.mxu0 %v880
        %v919 = vpop.f32.mrf.mxu0
        %v920 = vadd.f32 %v856, %v919
        %921 = vdwg.mxu0
        %s922 = scalar_lea.vmem %s2, 64
        %v923 = vld [vmem:[%s922] sm:$0xff]
        %924 = vrot.lane.b32.xlu0 %v388, 94
        %v925 = vpop.permute.xlu0 %924
        %926 = vrot.lane.b32.xlu0 %v389, 94
        %v927 = vpop.permute.xlu0 %926
        %928 = vrot.lane.b32.xlu0 %v394, 94
        %v929 = vpop.permute.xlu0 %928
        %930 = vrot.lane.b32.xlu0 %v390, 94
        %v931 = vpop.permute.xlu0 %930
        %932 = vrot.lane.b32.xlu0 %v391, 94
        %v933 = vpop.permute.xlu0 %932
        %934 = vrot.lane.b32.xlu0 %v395, 94
        %v935 = vpop.permute.xlu0 %934
        %vm936 = vcmask 769024
        %v937 = vsel %vm936, %v925, %v927
        %v938 = vsel %vm936, %v927, %v929
        %v939 = vsel %vm936, %v931, %v933
        %v940 = vsel %vm936, %v933, %v935
        %v946 = vsel %vm423, %v923, 0
        %948 = vmatpush.msra.mxu0 0.0
        %949 = vmatpush.msra.mxu0 0.0
        %950 = vmatpush.msra.mxu0 0.0
        %951 = vmatpush.msra.mxu0 0.0
        %952 = vmatpush.msra.mxu0 0.0
        %953 = vmatpush.msra.mxu0 0.0
        %954 = vmatpush.msra.mxu0 0.0
        %955 = vmatpush.msra.mxu0 0.0
        %956 = vmatpush.msra.mxu0 0.0
        %957 = vmatpush.msra.mxu0 0.0
        %958 = vmatpush.msra.mxu0 0.0
        %959 = vmatpush.msra.mxu0 0.0
        %960 = vmatpush.msra.mxu0 0.0
        %961 = vmatpush.msra.mxu0 0.0
        %962 = vmatpush.msra.mxu0 %v939
        %963 = vmatpush.msra.mxu0 %v937
        %964 = vmatmul.f32.gmra.mxu0 %v946
        %v965 = vpop.f32.mrf.mxu0
        %v966 = vadd.f32 0.0, %v965
        %967 = vdwg.mxu0
        %968 = vmatpush.msra.mxu0 0.0
        %969 = vmatpush.msra.mxu0 0.0
        %970 = vmatpush.msra.mxu0 0.0
        %971 = vmatpush.msra.mxu0 0.0
        %972 = vmatpush.msra.mxu0 0.0
        %973 = vmatpush.msra.mxu0 0.0
        %974 = vmatpush.msra.mxu0 0.0
        %975 = vmatpush.msra.mxu0 0.0
        %976 = vmatpush.msra.mxu0 0.0
        %977 = vmatpush.msra.mxu0 0.0
        %978 = vmatpush.msra.mxu0 0.0
        %979 = vmatpush.msra.mxu0 0.0
        %980 = vmatpush.msra.mxu0 0.0
        %981 = vmatpush.msra.mxu0 0.0
        %982 = vmatpush.msra.mxu0 %v940
        %983 = vmatpush.msra.mxu0 %v938
        %984 = vmatmul.f32.gmra.mxu0 %v946
        %v985 = vpop.f32.mrf.mxu0
        %v986 = vadd.f32 0.0, %v985
        %987 = vdwg.mxu0
        %v988 = vadd.f32 %v900, %v966
        %v989 = vadd.f32 %v920, %v986
        %s990 = scalar_lea.vmem %s1, 1
        %v991 = vld [vmem:[%s990] ss:$2 sm:$0x3]
        %v993 = vperm.slane %v991, 0
        %v994 = vperm.slane %v991, 1
        %v997 = vmul.f32 %v988, %v993
        %v998 = vmul.f32 %v989, %v994
        %v999 = vadd.f32 %v788, %v997
        %v1000 = vadd.f32 %v789, %v998
        %v1001 = vld [vmem:[%s3] sm:$0xff]
        %1003 = vset.pattern.permute.xlu0 0
        %1004 = vperm.xlu0 %1003, %v1001
        %v1005 = vpop.permute.xlu0 %1004
        %v1007 = vadd.f32 %v999, %v1005
        %v1008 = vadd.f32 %v1000, %v1005
        %v1009 = vmax.f32 %v1007, 0.0
        %v1010 = vmax.f32 %v1008, 0.0
        %1011 = vst [vmem:[#allocation2] sm:$0xff] 0.0
        %1012 = vst [vmem:[#allocation2 + $0x8] sm:$0xff] 0.0
        %vm1013 = vcmask 277504
        %1014 = vst.msk [vmem:[#allocation2 + $0x10] sm:$0xff] %vm1013, 0.0
        %1017 = vrot.lane.b32.xlu0 %v1009, 17
        %v1018 = vpop.permute.xlu0 %1017
        %1019 = vrot.lane.b32.xlu0 %v1010, 17
        %v1020 = vpop.permute.xlu0 %1019
        %vm1021 = vcmask 138240
        %v1022 = vsel %vm1021, %v1018, %v1020
        %vm1026 = vcmask 1047688
        %1027 = vst.msk [vmem:[#allocation2] sm:$0xff] %vm1026, %v1018
        %1028 = vst [vmem:[#allocation2 + $0x8] sm:$0xff] %v1022
        %1029 = vst.msk [vmem:[#allocation2 + $0x10] sm:$0xff] %vm1021, %v1020
        %v1030 = vld [vmem:[%s4] sm:$0xff]
        %v1031 = vld [vmem:[#allocation2] sm:$0xff]
        %v1032 = vld [vmem:[#allocation2 + $0x8] sm:$0xff]
        %s1033 = scalar_lea.vmem %s4, 24
        %v1034 = vld [vmem:[%s1033] sm:$0xff]
        %v1035 = vld [vmem:[#allocation2 + $0x10] sm:$0xff]
        %1039 = vrot.lane.b32.xlu0 %v1031, 112
        %v1040 = vpop.permute.xlu0 %1039
        %1041 = vrot.lane.b32.xlu0 %v1032, 112
        %v1042 = vpop.permute.xlu0 %1041
        %1043 = vrot.lane.b32.xlu0 %v1035, 112
        %v1044 = vpop.permute.xlu0 %1043
        %v1045 = vsel %vm414, %v1040, %v1042
        %v1046 = vsel %vm414, %v1042, %v1044
        %vm1049 = vcmask 64512
        %v1051 = vsel %vm1049, %v1034, 0
        %1053 = vmatpush.msra.mxu0 0.0
        %1054 = vmatpush.msra.mxu0 0.0
        %1055 = vmatpush.msra.mxu0 0.0
        %1056 = vmatpush.msra.mxu0 0.0
        %1057 = vmatpush.msra.mxu0 0.0
        %1058 = vmatpush.msra.mxu0 0.0
        %1059 = vmatpush.msra.mxu0 0.0
        %1060 = vmatpush.msra.mxu0 0.0
        %1061 = vmatpush.msra.mxu0 0.0
        %1062 = vmatpush.msra.mxu0 0.0
        %1063 = vmatpush.msra.mxu0 0.0
        %1064 = vmatpush.msra.mxu0 0.0
        %1065 = vmatpush.msra.mxu0 0.0
        %1066 = vmatpush.msra.mxu0 0.0
        %1067 = vmatpush.msra.mxu0 0.0
        %1068 = vmatpush.msra.mxu0 %v1045
        %1069 = vmatmul.f32.gmra.mxu0 %v1051
        %v1070 = vpop.f32.mrf.mxu0
        %v1071 = vadd.f32 0.0, %v1070
        %1072 = vdwg.mxu0
        %1073 = vmatpush.msra.mxu0 0.0
        %1074 = vmatpush.msra.mxu0 0.0
        %1075 = vmatpush.msra.mxu0 0.0
        %1076 = vmatpush.msra.mxu0 0.0
        %1077 = vmatpush.msra.mxu0 0.0
        %1078 = vmatpush.msra.mxu0 0.0
        %1079 = vmatpush.msra.mxu0 0.0
        %1080 = vmatpush.msra.mxu0 0.0
        %1081 = vmatpush.msra.mxu0 0.0
        %1082 = vmatpush.msra.mxu0 0.0
        %1083 = vmatpush.msra.mxu0 0.0
        %1084 = vmatpush.msra.mxu0 0.0
        %1085 = vmatpush.msra.mxu0 0.0
        %1086 = vmatpush.msra.mxu0 0.0
        %1087 = vmatpush.msra.mxu0 0.0
        %1088 = vmatpush.msra.mxu0 %v1046
        %1089 = vmatmul.f32.gmra.mxu0 %v1051
        %v1090 = vpop.f32.mrf.mxu0
        %v1091 = vadd.f32 0.0, %v1090
        %1092 = vdwg.mxu0
        %v1094 = vsel %vm1049, %v1030, 0
        %1096 = vmatpush.msra.mxu0 0.0
        %1097 = vmatpush.msra.mxu0 0.0
        %1098 = vmatpush.msra.mxu0 0.0
        %1099 = vmatpush.msra.mxu0 0.0
        %1100 = vmatpush.msra.mxu0 0.0
        %1101 = vmatpush.msra.mxu0 0.0
        %1102 = vmatpush.msra.mxu0 0.0
        %1103 = vmatpush.msra.mxu0 0.0
        %1104 = vmatpush.msra.mxu0 0.0
        %1105 = vmatpush.msra.mxu0 0.0
        %1106 = vmatpush.msra.mxu0 0.0
        %1107 = vmatpush.msra.mxu0 0.0
        %1108 = vmatpush.msra.mxu0 0.0
        %1109 = vmatpush.msra.mxu0 0.0
        %1110 = vmatpush.msra.mxu0 0.0
        %1111 = vmatpush.msra.mxu0 %v1031
        %1112 = vmatmul.f32.gmra.mxu0 %v1094
        %v1113 = vpop.f32.mrf.mxu0
        %v1114 = vadd.f32 %v1071, %v1113
        %1115 = vdwg.mxu0
        %1116 = vmatpush.msra.mxu0 0.0
        %1117 = vmatpush.msra.mxu0 0.0
        %1118 = vmatpush.msra.mxu0 0.0
        %1119 = vmatpush.msra.mxu0 0.0
        %1120 = vmatpush.msra.mxu0 0.0
        %1121 = vmatpush.msra.mxu0 0.0
        %1122 = vmatpush.msra.mxu0 0.0
        %1123 = vmatpush.msra.mxu0 0.0
        %1124 = vmatpush.msra.mxu0 0.0
        %1125 = vmatpush.msra.mxu0 0.0
        %1126 = vmatpush.msra.mxu0 0.0
        %1127 = vmatpush.msra.mxu0 0.0
        %1128 = vmatpush.msra.mxu0 0.0
        %1129 = vmatpush.msra.mxu0 0.0
        %1130 = vmatpush.msra.mxu0 0.0
        %1131 = vmatpush.msra.mxu0 %v1032
        %1132 = vmatmul.f32.gmra.mxu0 %v1094
        %v1133 = vpop.f32.mrf.mxu0
        %v1134 = vadd.f32 %v1091, %v1133
        %1135 = vdwg.mxu0
        %s1136 = scalar_lea.vmem %s4, 48
        %v1137 = vld [vmem:[%s1136] sm:$0xff]
        %1138 = vrot.lane.b32.xlu0 %v1031, 96
        %v1139 = vpop.permute.xlu0 %1138
        %1140 = vrot.lane.b32.xlu0 %v1032, 96
        %v1141 = vpop.permute.xlu0 %1140
        %1142 = vrot.lane.b32.xlu0 %v1035, 96
        %v1143 = vpop.permute.xlu0 %1142
        %v1144 = vsel %vm524, %v1139, %v1141
        %v1145 = vsel %vm524, %v1141, %v1143
        %v1149 = vsel %vm1049, %v1137, 0
        %1151 = vmatpush.msra.mxu0 0.0
        %1152 = vmatpush.msra.mxu0 0.0
        %1153 = vmatpush.msra.mxu0 0.0
        %1154 = vmatpush.msra.mxu0 0.0
        %1155 = vmatpush.msra.mxu0 0.0
        %1156 = vmatpush.msra.mxu0 0.0
        %1157 = vmatpush.msra.mxu0 0.0
        %1158 = vmatpush.msra.mxu0 0.0
        %1159 = vmatpush.msra.mxu0 0.0
        %1160 = vmatpush.msra.mxu0 0.0
        %1161 = vmatpush.msra.mxu0 0.0
        %1162 = vmatpush.msra.mxu0 0.0
        %1163 = vmatpush.msra.mxu0 0.0
        %1164 = vmatpush.msra.mxu0 0.0
        %1165 = vmatpush.msra.mxu0 0.0
        %1166 = vmatpush.msra.mxu0 %v1144
        %1167 = vmatmul.f32.gmra.mxu0 %v1149
        %v1168 = vpop.f32.mrf.mxu0
        %v1169 = vadd.f32 0.0, %v1168
        %1170 = vdwg.mxu0
        %1171 = vmatpush.msra.mxu0 0.0
        %1172 = vmatpush.msra.mxu0 0.0
        %1173 = vmatpush.msra.mxu0 0.0
        %1174 = vmatpush.msra.mxu0 0.0
        %1175 = vmatpush.msra.mxu0 0.0
        %1176 = vmatpush.msra.mxu0 0.0
        %1177 = vmatpush.msra.mxu0 0.0
        %1178 = vmatpush.msra.mxu0 0.0
        %1179 = vmatpush.msra.mxu0 0.0
        %1180 = vmatpush.msra.mxu0 0.0
        %1181 = vmatpush.msra.mxu0 0.0
        %1182 = vmatpush.msra.mxu0 0.0
        %1183 = vmatpush.msra.mxu0 0.0
        %1184 = vmatpush.msra.mxu0 0.0
        %1185 = vmatpush.msra.mxu0 0.0
        %1186 = vmatpush.msra.mxu0 %v1145
        %1187 = vmatmul.f32.gmra.mxu0 %v1149
        %v1188 = vpop.f32.mrf.mxu0
        %v1189 = vadd.f32 0.0, %v1188
        %1190 = vdwg.mxu0
        %v1191 = vadd.f32 %v1114, %v1169
        %v1192 = vadd.f32 %v1134, %v1189
        %v1193 = vld [vmem:[%s1] ss:$2 sm:$0x3]
        %v1195 = vperm.slane %v1193, 0
        %v1196 = vperm.slane %v1193, 1
        %v1199 = vmul.f32 %v1191, %v1195
        %v1200 = vmul.f32 %v1192, %v1196
        %v1201 = vadd.f32 %v1199, 0.0
        %v1202 = vadd.f32 %v1200, 0.0
        %s1203 = scalar_lea.vmem %s4, 8
        %v1204 = vld [vmem:[%s1203] sm:$0xff]
        %s1205 = scalar_lea.vmem %s4, 32
        %v1206 = vld [vmem:[%s1205] sm:$0xff]
        %1207 = vrot.lane.b32.xlu0 %v1031, 111
        %v1208 = vpop.permute.xlu0 %1207
        %1209 = vrot.lane.b32.xlu0 %v1032, 111
        %v1210 = vpop.permute.xlu0 %1209
        %1211 = vrot.lane.b32.xlu0 %v1035, 111
        %v1212 = vpop.permute.xlu0 %1211
        %v1213 = vsel %vm604, %v1208, %v1210
        %v1214 = vsel %vm604, %v1210, %v1212
        %v1218 = vsel %vm1049, %v1206, 0
        %1220 = vmatpush.msra.mxu0 0.0
        %1221 = vmatpush.msra.mxu0 0.0
        %1222 = vmatpush.msra.mxu0 0.0
        %1223 = vmatpush.msra.mxu0 0.0
        %1224 = vmatpush.msra.mxu0 0.0
        %1225 = vmatpush.msra.mxu0 0.0
        %1226 = vmatpush.msra.mxu0 0.0
        %1227 = vmatpush.msra.mxu0 0.0
        %1228 = vmatpush.msra.mxu0 0.0
        %1229 = vmatpush.msra.mxu0 0.0
        %1230 = vmatpush.msra.mxu0 0.0
        %1231 = vmatpush.msra.mxu0 0.0
        %1232 = vmatpush.msra.mxu0 0.0
        %1233 = vmatpush.msra.mxu0 0.0
        %1234 = vmatpush.msra.mxu0 0.0
        %1235 = vmatpush.msra.mxu0 %v1213
        %1236 = vmatmul.f32.gmra.mxu0 %v1218
        %v1237 = vpop.f32.mrf.mxu0
        %v1238 = vadd.f32 0.0, %v1237
        %1239 = vdwg.mxu0
        %1240 = vmatpush.msra.mxu0 0.0
        %1241 = vmatpush.msra.mxu0 0.0
        %1242 = vmatpush.msra.mxu0 0.0
        %1243 = vmatpush.msra.mxu0 0.0
        %1244 = vmatpush.msra.mxu0 0.0
        %1245 = vmatpush.msra.mxu0 0.0
        %1246 = vmatpush.msra.mxu0 0.0
        %1247 = vmatpush.msra.mxu0 0.0
        %1248 = vmatpush.msra.mxu0 0.0
        %1249 = vmatpush.msra.mxu0 0.0
        %1250 = vmatpush.msra.mxu0 0.0
        %1251 = vmatpush.msra.mxu0 0.0
        %1252 = vmatpush.msra.mxu0 0.0
        %1253 = vmatpush.msra.mxu0 0.0
        %1254 = vmatpush.msra.mxu0 0.0
        %1255 = vmatpush.msra.mxu0 %v1214
        %1256 = vmatmul.f32.gmra.mxu0 %v1218
        %v1257 = vpop.f32.mrf.mxu0
        %v1258 = vadd.f32 0.0, %v1257
        %1259 = vdwg.mxu0
        %1260 = vrot.lane.b32.xlu0 %v1031, 127
        %v1261 = vpop.permute.xlu0 %1260
        %1262 = vrot.lane.b32.xlu0 %v1032, 127
        %v1263 = vpop.permute.xlu0 %1262
        %1264 = vrot.lane.b32.xlu0 %v1035, 127
        %v1265 = vpop.permute.xlu0 %1264
        %v1266 = vsel %vm668, %v1261, %v1263
        %v1267 = vsel %vm668, %v1263, %v1265
        %v1271 = vsel %vm1049, %v1204, 0
        %1273 = vmatpush.msra.mxu0 0.0
        %1274 = vmatpush.msra.mxu0 0.0
        %1275 = vmatpush.msra.mxu0 0.0
        %1276 = vmatpush.msra.mxu0 0.0
        %1277 = vmatpush.msra.mxu0 0.0
        %1278 = vmatpush.msra.mxu0 0.0
        %1279 = vmatpush.msra.mxu0 0.0
        %1280 = vmatpush.msra.mxu0 0.0
        %1281 = vmatpush.msra.mxu0 0.0
        %1282 = vmatpush.msra.mxu0 0.0
        %1283 = vmatpush.msra.mxu0 0.0
        %1284 = vmatpush.msra.mxu0 0.0
        %1285 = vmatpush.msra.mxu0 0.0
        %1286 = vmatpush.msra.mxu0 0.0
        %1287 = vmatpush.msra.mxu0 0.0
        %1288 = vmatpush.msra.mxu0 %v1266
        %1289 = vmatmul.f32.gmra.mxu0 %v1271
        %v1290 = vpop.f32.mrf.mxu0
        %v1291 = vadd.f32 %v1238, %v1290
        %1292 = vdwg.mxu0
        %1293 = vmatpush.msra.mxu0 0.0
        %1294 = vmatpush.msra.mxu0 0.0
        %1295 = vmatpush.msra.mxu0 0.0
        %1296 = vmatpush.msra.mxu0 0.0
        %1297 = vmatpush.msra.mxu0 0.0
        %1298 = vmatpush.msra.mxu0 0.0
        %1299 = vmatpush.msra.mxu0 0.0
        %1300 = vmatpush.msra.mxu0 0.0
        %1301 = vmatpush.msra.mxu0 0.0
        %1302 = vmatpush.msra.mxu0 0.0
        %1303 = vmatpush.msra.mxu0 0.0
        %1304 = vmatpush.msra.mxu0 0.0
        %1305 = vmatpush.msra.mxu0 0.0
        %1306 = vmatpush.msra.mxu0 0.0
        %1307 = vmatpush.msra.mxu0 0.0
        %1308 = vmatpush.msra.mxu0 %v1267
        %1309 = vmatmul.f32.gmra.mxu0 %v1271
        %v1310 = vpop.f32.mrf.mxu0
        %v1311 = vadd.f32 %v1258, %v1310
        %1312 = vdwg.mxu0
        %s1313 = scalar_lea.vmem %s4, 56
        %v1314 = vld [vmem:[%s1313] sm:$0xff]
        %1315 = vrot.lane.b32.xlu0 %v1031, 95
        %v1316 = vpop.permute.xlu0 %1315
        %1317 = vrot.lane.b32.xlu0 %v1032, 95
        %v1318 = vpop.permute.xlu0 %1317
        %1319 = vrot.lane.b32.xlu0 %v1035, 95
        %v1320 = vpop.permute.xlu0 %1319
        %v1321 = vsel %vm734, %v1316, %v1318
        %v1322 = vsel %vm734, %v1318, %v1320
        %v1326 = vsel %vm1049, %v1314, 0
        %1328 = vmatpush.msra.mxu0 0.0
        %1329 = vmatpush.msra.mxu0 0.0
        %1330 = vmatpush.msra.mxu0 0.0
        %1331 = vmatpush.msra.mxu0 0.0
        %1332 = vmatpush.msra.mxu0 0.0
        %1333 = vmatpush.msra.mxu0 0.0
        %1334 = vmatpush.msra.mxu0 0.0
        %1335 = vmatpush.msra.mxu0 0.0
        %1336 = vmatpush.msra.mxu0 0.0
        %1337 = vmatpush.msra.mxu0 0.0
        %1338 = vmatpush.msra.mxu0 0.0
        %1339 = vmatpush.msra.mxu0 0.0
        %1340 = vmatpush.msra.mxu0 0.0
        %1341 = vmatpush.msra.mxu0 0.0
        %1342 = vmatpush.msra.mxu0 0.0
        %1343 = vmatpush.msra.mxu0 %v1321
        %1344 = vmatmul.f32.gmra.mxu0 %v1326
        %v1345 = vpop.f32.mrf.mxu0
        %v1346 = vadd.f32 0.0, %v1345
        %1347 = vdwg.mxu0
        %1348 = vmatpush.msra.mxu0 0.0
        %1349 = vmatpush.msra.mxu0 0.0
        %1350 = vmatpush.msra.mxu0 0.0
        %1351 = vmatpush.msra.mxu0 0.0
        %1352 = vmatpush.msra.mxu0 0.0
        %1353 = vmatpush.msra.mxu0 0.0
        %1354 = vmatpush.msra.mxu0 0.0
        %1355 = vmatpush.msra.mxu0 0.0
        %1356 = vmatpush.msra.mxu0 0.0
        %1357 = vmatpush.msra.mxu0 0.0
        %1358 = vmatpush.msra.mxu0 0.0
        %1359 = vmatpush.msra.mxu0 0.0
        %1360 = vmatpush.msra.mxu0 0.0
        %1361 = vmatpush.msra.mxu0 0.0
        %1362 = vmatpush.msra.mxu0 0.0
        %1363 = vmatpush.msra.mxu0 %v1322
        %1364 = vmatmul.f32.gmra.mxu0 %v1326
        %v1365 = vpop.f32.mrf.mxu0
        %v1366 = vadd.f32 0.0, %v1365
        %1367 = vdwg.mxu0
        %v1368 = vadd.f32 %v1291, %v1346
        %v1369 = vadd.f32 %v1311, %v1366
        %v1370 = vadd.f32 %v1201, %v1368
        %v1371 = vadd.f32 %v1202, %v1369
        %s1372 = scalar_lea.vmem %s4, 16
        %v1373 = vld [vmem:[%s1372] sm:$0xff]
        %s1374 = scalar_lea.vmem %s4, 40
        %v1375 = vld [vmem:[%s1374] sm:$0xff]
        %1376 = vrot.lane.b32.xlu0 %v1031, 110
        %v1377 = vpop.permute.xlu0 %1376
        %1378 = vrot.lane.b32.xlu0 %v1032, 110
        %v1379 = vpop.permute.xlu0 %1378
        %1380 = vrot.lane.b32.xlu0 %v1035, 110
        %v1381 = vpop.permute.xlu0 %1380
        %v1382 = vsel %vm806, %v1377, %v1379
        %v1383 = vsel %vm806, %v1379, %v1381
        %v1387 = vsel %vm1049, %v1375, 0
        %1389 = vmatpush.msra.mxu0 0.0
        %1390 = vmatpush.msra.mxu0 0.0
        %1391 = vmatpush.msra.mxu0 0.0
        %1392 = vmatpush.msra.mxu0 0.0
        %1393 = vmatpush.msra.mxu0 0.0
        %1394 = vmatpush.msra.mxu0 0.0
        %1395 = vmatpush.msra.mxu0 0.0
        %1396 = vmatpush.msra.mxu0 0.0
        %1397 = vmatpush.msra.mxu0 0.0
        %1398 = vmatpush.msra.mxu0 0.0
        %1399 = vmatpush.msra.mxu0 0.0
        %1400 = vmatpush.msra.mxu0 0.0
        %1401 = vmatpush.msra.mxu0 0.0
        %1402 = vmatpush.msra.mxu0 0.0
        %1403 = vmatpush.msra.mxu0 0.0
        %1404 = vmatpush.msra.mxu0 %v1382
        %1405 = vmatmul.f32.gmra.mxu0 %v1387
        %v1406 = vpop.f32.mrf.mxu0
        %v1407 = vadd.f32 0.0, %v1406
        %1408 = vdwg.mxu0
        %1409 = vmatpush.msra.mxu0 0.0
        %1410 = vmatpush.msra.mxu0 0.0
        %1411 = vmatpush.msra.mxu0 0.0
        %1412 = vmatpush.msra.mxu0 0.0
        %1413 = vmatpush.msra.mxu0 0.0
        %1414 = vmatpush.msra.mxu0 0.0
        %1415 = vmatpush.msra.mxu0 0.0
        %1416 = vmatpush.msra.mxu0 0.0
        %1417 = vmatpush.msra.mxu0 0.0
        %1418 = vmatpush.msra.mxu0 0.0
        %1419 = vmatpush.msra.mxu0 0.0
        %1420 = vmatpush.msra.mxu0 0.0
        %1421 = vmatpush.msra.mxu0 0.0
        %1422 = vmatpush.msra.mxu0 0.0
        %1423 = vmatpush.msra.mxu0 0.0
        %1424 = vmatpush.msra.mxu0 %v1383
        %1425 = vmatmul.f32.gmra.mxu0 %v1387
        %v1426 = vpop.f32.mrf.mxu0
        %v1427 = vadd.f32 0.0, %v1426
        %1428 = vdwg.mxu0
        %1429 = vrot.lane.b32.xlu0 %v1031, 126
        %v1430 = vpop.permute.xlu0 %1429
        %1431 = vrot.lane.b32.xlu0 %v1032, 126
        %v1432 = vpop.permute.xlu0 %1431
        %1433 = vrot.lane.b32.xlu0 %v1035, 126
        %v1434 = vpop.permute.xlu0 %1433
        %v1435 = vsel %vm870, %v1430, %v1432
        %v1436 = vsel %vm870, %v1432, %v1434
        %v1440 = vsel %vm1049, %v1373, 0
        %1442 = vmatpush.msra.mxu0 0.0
        %1443 = vmatpush.msra.mxu0 0.0
        %1444 = vmatpush.msra.mxu0 0.0
        %1445 = vmatpush.msra.mxu0 0.0
        %1446 = vmatpush.msra.mxu0 0.0
        %1447 = vmatpush.msra.mxu0 0.0
        %1448 = vmatpush.msra.mxu0 0.0
        %1449 = vmatpush.msra.mxu0 0.0
        %1450 = vmatpush.msra.mxu0 0.0
        %1451 = vmatpush.msra.mxu0 0.0
        %1452 = vmatpush.msra.mxu0 0.0
        %1453 = vmatpush.msra.mxu0 0.0
        %1454 = vmatpush.msra.mxu0 0.0
        %1455 = vmatpush.msra.mxu0 0.0
        %1456 = vmatpush.msra.mxu0 0.0
        %1457 = vmatpush.msra.mxu0 %v1435
        %1458 = vmatmul.f32.gmra.mxu0 %v1440
        %v1459 = vpop.f32.mrf.mxu0
        %v1460 = vadd.f32 %v1407, %v1459
        %1461 = vdwg.mxu0
        %1462 = vmatpush.msra.mxu0 0.0
        %1463 = vmatpush.msra.mxu0 0.0
        %1464 = vmatpush.msra.mxu0 0.0
        %1465 = vmatpush.msra.mxu0 0.0
        %1466 = vmatpush.msra.mxu0 0.0
        %1467 = vmatpush.msra.mxu0 0.0
        %1468 = vmatpush.msra.mxu0 0.0
        %1469 = vmatpush.msra.mxu0 0.0
        %1470 = vmatpush.msra.mxu0 0.0
        %1471 = vmatpush.msra.mxu0 0.0
        %1472 = vmatpush.msra.mxu0 0.0
        %1473 = vmatpush.msra.mxu0 0.0
        %1474 = vmatpush.msra.mxu0 0.0
        %1475 = vmatpush.msra.mxu0 0.0
        %1476 = vmatpush.msra.mxu0 0.0
        %1477 = vmatpush.msra.mxu0 %v1436
        %1478 = vmatmul.f32.gmra.mxu0 %v1440
        %v1479 = vpop.f32.mrf.mxu0
        %v1480 = vadd.f32 %v1427, %v1479
        %1481 = vdwg.mxu0
        %s1482 = scalar_lea.vmem %s4, 64
        %v1483 = vld [vmem:[%s1482] sm:$0xff]
        %1484 = vrot.lane.b32.xlu0 %v1031, 94
        %v1485 = vpop.permute.xlu0 %1484
        %1486 = vrot.lane.b32.xlu0 %v1032, 94
        %v1487 = vpop.permute.xlu0 %1486
        %1488 = vrot.lane.b32.xlu0 %v1035, 94
        %v1489 = vpop.permute.xlu0 %1488
        %v1490 = vsel %vm936, %v1485, %v1487
        %v1491 = vsel %vm936, %v1487, %v1489
        %v1495 = vsel %vm1049, %v1483, 0
        %1497 = vmatpush.msra.mxu0 0.0
        %1498 = vmatpush.msra.mxu0 0.0
        %1499 = vmatpush.msra.mxu0 0.0
        %1500 = vmatpush.msra.mxu0 0.0
        %1501 = vmatpush.msra.mxu0 0.0
        %1502 = vmatpush.msra.mxu0 0.0
        %1503 = vmatpush.msra.mxu0 0.0
        %1504 = vmatpush.msra.mxu0 0.0
        %1505 = vmatpush.msra.mxu0 0.0
        %1506 = vmatpush.msra.mxu0 0.0
        %1507 = vmatpush.msra.mxu0 0.0
        %1508 = vmatpush.msra.mxu0 0.0
        %1509 = vmatpush.msra.mxu0 0.0
        %1510 = vmatpush.msra.mxu0 0.0
        %1511 = vmatpush.msra.mxu0 0.0
        %1512 = vmatpush.msra.mxu0 %v1490
        %1513 = vmatmul.f32.gmra.mxu0 %v1495
        %v1514 = vpop.f32.mrf.mxu0
        %v1515 = vadd.f32 0.0, %v1514
        %1516 = vdwg.mxu0
        %1517 = vmatpush.msra.mxu0 0.0
        %1518 = vmatpush.msra.mxu0 0.0
        %1519 = vmatpush.msra.mxu0 0.0
        %1520 = vmatpush.msra.mxu0 0.0
        %1521 = vmatpush.msra.mxu0 0.0
        %1522 = vmatpush.msra.mxu0 0.0
        %1523 = vmatpush.msra.mxu0 0.0
        %1524 = vmatpush.msra.mxu0 0.0
        %1525 = vmatpush.msra.mxu0 0.0
        %1526 = vmatpush.msra.mxu0 0.0
        %1527 = vmatpush.msra.mxu0 0.0
        %1528 = vmatpush.msra.mxu0 0.0
        %1529 = vmatpush.msra.mxu0 0.0
        %1530 = vmatpush.msra.mxu0 0.0
        %1531 = vmatpush.msra.mxu0 0.0
        %1532 = vmatpush.msra.mxu0 %v1491
        %1533 = vmatmul.f32.gmra.mxu0 %v1495
        %v1534 = vpop.f32.mrf.mxu0
        %v1535 = vadd.f32 0.0, %v1534
        %1536 = vdwg.mxu0
        %v1537 = vadd.f32 %v1460, %v1515
        %v1538 = vadd.f32 %v1480, %v1535
        %v1539 = vld [vmem:[%s990] ss:$2 sm:$0x3]
        %v1541 = vperm.slane %v1539, 0
        %v1542 = vperm.slane %v1539, 1
        %v1545 = vmul.f32 %v1537, %v1541
        %v1546 = vmul.f32 %v1538, %v1542
        %v1547 = vadd.f32 %v1370, %v1545
        %v1548 = vadd.f32 %v1371, %v1546
        %v1549 = vld [vmem:[%s5] sm:$0xff]
        %1551 = vset.pattern.permute.xlu0 0
        %1552 = vperm.xlu0 %1551, %v1549
        %v1553 = vpop.permute.xlu0 %1552
        %v1555 = vadd.f32 %v1547, %v1553
        %v1556 = vadd.f32 %v1548, %v1553
        %v1557 = vxor.u32 %v1555, 2147483648
        %v1558 = vxor.u32 %v1556, 2147483648
        %v1559 = vmul.f32 %v1557, 1.442695
        %v1560 = vpow.pop %v1559
        %v1561 = vmul.f32 %v1558, 1.442695
        %v1562 = vpow.pop %v1561
        %v1563 = vadd.f32 %v1560, 1.0
        %v1564 = vadd.f32 %v1562, 1.0
        %v1565 = vrcp.pop %v1563
        %v1566 = vmul.f32 %v1563, %v1565
        %v1567 = vsub.f32 1.0, %v1566
        %v1568 = vmul.f32 %v1565, %v1567
        %v1569 = vadd.f32 %v1565, %v1568
        %vm1570 = vweird.f32 %v1563
        %vm1571 = vweird.f32 %v1565
        %vm1572 = vmor %vm1570, %vm1571
        %v1573 = vsel %vm1572, %v1565, %v1569
        %v1574 = vand.u32 2147483647, %v1563
        %vm1575 = vcmp.eq.f32.partialorder %v1574, 8.507059e+37
        %v1576 = vand.u32 %v1563, 2147483648
        %v1577 = vor.u32 1.1754944e-38, %v1576
        %v1578 = vsel %vm1575, %v1577, %v1573
        %v1579 = vmul.f32 1.0, %v1578
        %v1580 = vrcp.pop %v1564
        %v1581 = vmul.f32 %v1564, %v1580
        %v1582 = vsub.f32 1.0, %v1581
        %v1583 = vmul.f32 %v1580, %v1582
        %v1584 = vadd.f32 %v1580, %v1583
        %vm1585 = vweird.f32 %v1564
        %vm1586 = vweird.f32 %v1580
        %vm1587 = vmor %vm1585, %vm1586
        %v1588 = vsel %vm1587, %v1580, %v1584
        %v1589 = vand.u32 2147483647, %v1564
        %vm1590 = vcmp.eq.f32.partialorder %v1589, 8.507059e+37
        %v1591 = vand.u32 %v1564, 2147483648
        %v1592 = vor.u32 1.1754944e-38, %v1591
        %v1593 = vsel %vm1590, %v1592, %v1588
        %v1594 = vmul.f32 1.0, %v1593
        %1595 = vst [vmem:[#allocation3] sm:$0xff] %v1579
        %1596 = vst [vmem:[#allocation3 + $0x8] sm:$0xff] %v1594
        %1597 = vst [vmem:[%s371] sm:$0xff] %v1579
        %1598 = vst [vmem:[%s371 + $0x8] sm:$0xff] %v1594
      $region52: #{radar_occupancy_forward.1} parent=47 // pred_fallthru
        _
      %v1599 = vld [vmem:[%s365] sm:$0xff]
      %v1600 = vld [vmem:[%s365 + $0x8] sm:$0xff]
      %v1601 = vld [vmem:[%s365 + $0x10] sm:$0xff]
      %v1602 = vld [vmem:[%s365 + $0x18] sm:$0xff]
      %v1603 = vld [vmem:[#allocation3] sm:$0xff]
      %v1604 = vld [vmem:[#allocation3 + $0x8] sm:$0xff]
      %v1605 = vmul.f32 %v1599, %v1603
      %v1606 = vmul.f32 %v1600, %v1604
      %v1607 = vmul.f32 %v1601, %v1603
      %v1608 = vmul.f32 %v1602, %v1604
      %1609 = vst [vmem:[%s381] sm:$0xff] %v1605
      %1610 = vst [vmem:[%s381 + $0x8] sm:$0xff] %v1606
      %1611 = vst [vmem:[%s381 + $0x10] sm:$0xff] %v1607
      %1612 = vst [vmem:[%s381 + $0x18] sm:$0xff] %v1608
      %p1613 = scmp.lt.s32.totalorder %s24, 1
      %s1614 = scalar_select %p1613, %s24, 1
      %s1615 = smul.addr %s1614, 2
      %s1616 = smul.addr %s1615, 8
      %s1617 = scalar_lea.vmem %s7, %s1616
      %s1618 = smul.u32 2, %s25
      %p1619 = scmp.lt.s32.totalorder %s24, 1
      %s1620 = scalar_select %p1619, %s24, 1
      %p1621 = scmp.lt.s32.totalorder %s1618, 3
      %s1622 = scalar_select %p1621, %s1618, 3
      %s1623 = smul.addr %s1622, 2
      %s1624 = smul.addr %s1620, 8
      %s1625 = sadd.s32 %s1623, %s1624
      %s1626 = smul.addr %s1625, 8
      %s1627 = scalar_lea.vmem %s8, %s1626
      // Predicated region
      $region53: #{radar_occupancy_forward.1} parent=47 // pred_check
        %p1628 = pneg %p209
      $region54: #{radar_occupancy_forward.1} parent=47 // pred_check_branch
        %1630 = sbr.rel (%p1628) target = $region56
      $region55: #{radar_occupancy_forward.1} parent=47 // pred_region
        _
      $region56: #{radar_occupancy_forward.1} parent=47 // pred_fallthru
        _
      // Predicated region
      $region57: #{radar_occupancy_forward.1} parent=47 // pred_check
        %p1631 = pneg %p237
      $region58: #{radar_occupancy_forward.1} parent=47 // pred_check_branch
        %1633 = sbr.rel (%p1631) target = $region60
      $region59: #{radar_occupancy_forward.1} parent=47 // pred_region
        %s1634 = smul.u32 2, %s25
      $region60: #{radar_occupancy_forward.1} parent=47 // pred_fallthru
        _
    $region48: #{radar_occupancy_forward.1} parent=5 // pred_fallthru
      _
    %p1635 = scmp.le.s32.totalorder 2, %s15
    // Predicated region
    $region61: #{radar_occupancy_forward.1} parent=5 // pred_check
      %p1636 = pneg %p1635
    $region62: #{radar_occupancy_forward.1} parent=5 // pred_check_branch
      %1638 = sbr.rel (%p1636) target = $region64
    $region63: #{radar_occupancy_forward.1} parent=5 // pred_region
      %s1639 = ssub.s32 %s15, 2
      // Predicated region
      $region65: #{radar_occupancy_forward.1} parent=63 // pred_check
        %p1640 = pneg %p215
      $region66: #{radar_occupancy_forward.1} parent=63 // pred_check_branch
        %1642 = sbr.rel (%p1640) target = $region68
      $region67: #{radar_occupancy_forward.1} parent=63 // pred_region
        %p1643 = scmp.lt.s32.totalorder %s26, 1
        %s1644 = scalar_select %p1643, %s26, 1
        %s1645 = smul.addr %s1644, 2
        %s1646 = smul.addr %s1645, 8
        %s1647 = scalar_lea.vmem %s7, %s1646
      $region68: #{radar_occupancy_forward.1} parent=63 // pred_fallthru
        _
      // Predicated region
      $region69: #{radar_occupancy_forward.1} parent=63 // pred_check
        %p1648 = pneg %p243
      $region70: #{radar_occupancy_forward.1} parent=63 // pred_check_branch
        %1650 = sbr.rel (%p1648) target = $region72
      $region71: #{radar_occupancy_forward.1} parent=63 // pred_region
        %s1651 = smul.u32 2, %s27
        %p1652 = scmp.lt.s32.totalorder %s26, 1
        %s1653 = scalar_select %p1652, %s26, 1
        %p1654 = scmp.lt.s32.totalorder %s1651, 3
        %s1655 = scalar_select %p1654, %s1651, 3
        %s1656 = smul.addr %s1655, 2
        %s1657 = smul.addr %s1653, 8
        %s1658 = sadd.s32 %s1656, %s1657
        %s1659 = smul.addr %s1658, 8
        %s1660 = scalar_lea.vmem %s8, %s1659
      $region72: #{radar_occupancy_forward.1} parent=63 // pred_fallthru
        _
    $region64: #{radar_occupancy_forward.1} parent=5 // pred_fallthru
      _
  $region6: #{radar_occupancy_forward.1} parent=0 // loop_footer
    %s19 = sadd.s32 1, %s15
  $region7: #{radar_occupancy_forward.1} parent=0 // loop_footer_branch
    %14 = sbr.rel target = $region3
  $region8: #{radar_occupancy_forward.1} parent=0 // loop_exit
    _

</llo_original>
